<compile_context>
chip_gen: v6e
topology: v6e:2x2x1
jax: 0.10.0
libtpu: 0.0.40
codegen_flags: <defaults>
</compile_context>

<pallas_src>
import jax
import jax.numpy as jnp
from jax.experimental import pallas as pl
from jax.experimental.pallas import tpu as pltpu

LN_EPS = 1e-5  # torch.nn.LayerNorm default


def _layernorm(v, g, b):
    mu = jnp.mean(v, axis=-1, keepdims=True)
    var = jnp.mean((v - mu) ** 2, axis=-1, keepdims=True)
    return (v - mu) * jax.lax.rsqrt(var + LN_EPS) * g + b


def decoder_layer(x, enc, p, *, n_heads, dim_attn):
    B, S, D = x.shape
    Se = enc.shape[1]
    H, A = n_heads, dim_attn
    bf16, f32 = jnp.bfloat16, jnp.float32

    def mha(q_rows, kv_rows, wq, wk, wv, wo, Sq, Skv):
        """Fused multi-head attention on flattened (B*rows, D) activations."""
        qb = q_rows.astype(bf16)
        kvb = kv_rows.astype(bf16)
        # Fused projections: 3 MXU matmuls cover all heads.
        q_all = jnp.dot(qb, wq, preferred_element_type=f32)    # (B*Sq,  H*A)
        k_all = jnp.dot(kvb, wk, preferred_element_type=f32)   # (B*Skv, H*A)
        v_all = jnp.dot(kvb, wv, preferred_element_type=f32)   # (B*Skv, H*D)

        scale = 1.0 / jnp.sqrt(jnp.float32(A))
        batch_outs = []
        for b in range(B):                         # tiny static unroll
            q_b = q_all[b * Sq:(b + 1) * Sq, :]
            k_b = k_all[b * Skv:(b + 1) * Skv, :]
            v_b = v_all[b * Skv:(b + 1) * Skv, :]
            head_outs = []
            for h in range(H):                     # tiny static unroll
                q = q_b[:, h * A:(h + 1) * A].astype(bf16)
                k = k_b[:, h * A:(h + 1) * A].astype(bf16)
                v = v_b[:, h * D:(h + 1) * D].astype(bf16)
                # scores = Q K^T / sqrt(dim_attn)
                s = jax.lax.dot_general(
                    q, k, (((1,), (1,)), ((), ())),
                    preferred_element_type=f32) * scale        # (Sq, Skv)
                s = s - jnp.max(s, axis=-1, keepdims=True)
                e = jnp.exp(s)
                pr = e * pl.reciprocal(
                    jnp.sum(e, axis=-1, keepdims=True), approx=True)
                head_outs.append(
                    jnp.dot(pr.astype(bf16), v,
                            preferred_element_type=f32))       # (Sq, D)
            batch_outs.append(jnp.concatenate(head_outs, axis=-1))  # (Sq, H*D)
        heads = jnp.concatenate(batch_outs, axis=0)                 # (B*Sq, H*D)
        # Single fused output projection over the concatenated heads.
        return jnp.dot(heads.astype(bf16), wo, preferred_element_type=f32)

    def kernel(x_ref, enc_ref,
               wq1_ref, wk1_ref, wv1_ref, wo1_ref,
               wq2_ref, wk2_ref, wv2_ref, wo2_ref,
               wfc1_ref, wfc2_ref, small_ref, o_ref):
        xr = x_ref[...].reshape(B * S, D)          # fold batch into rows
        encr = enc_ref[...].reshape(B * Se, D)

        sp = small_ref[...]                        # (8, D) f32 packed params
        bfc1, bfc2 = sp[0:1], sp[1:2]
        g1, b1 = sp[2:3], sp[3:4]
        g2, b2 = sp[4:5], sp[5:6]
        g3, b3 = sp[6:7], sp[7:8]

        # ---- self attention + residual + norm1 ----
        a = mha(xr, xr, wq1_ref[...], wk1_ref[...], wv1_ref[...], wo1_ref[...],
                S, S)
        xcur = _layernorm(a + xr, g1, b1)

        # ---- cross attention (kv = encoder) + residual + norm2 ----
        a = mha(xcur, encr, wq2_ref[...], wk2_ref[...], wv2_ref[...],
                wo2_ref[...], S, Se)
        xcur = _layernorm(a + xcur, g2, b2)

        # ---- feed-forward: fc1(elu(fc2(x))) + residual + norm3 ----
        h = jnp.dot(xcur.astype(bf16), wfc2_ref[...],
                    preferred_element_type=f32) + bfc2
        h = jnp.where(h > 0, h, jnp.exp(h) - 1.0)  # ELU(alpha=1.0)
        a = jnp.dot(h.astype(bf16), wfc1_ref[...],
                    preferred_element_type=f32) + bfc1
        xcur = _layernorm(xcur + a, g3, b3)

        o_ref[...] = xcur.reshape(B, S, D).astype(o_ref.dtype)

    vmem = pltpu.MemorySpace.VMEM
    args = (x, enc,
            p["wq1"], p["wk1"], p["wv1"], p["wo1"],
            p["wq2"], p["wk2"], p["wv2"], p["wo2"],
            p["wfc1"], p["wfc2"], p["small"])

    return pl.pallas_call(
        kernel,
        out_shape=jax.ShapeDtypeStruct((B, S, D), jnp.float32),
        in_specs=[pl.BlockSpec(memory_space=vmem)] * len(args),
        out_specs=pl.BlockSpec(memory_space=vmem),
    )(*args)


# ------------------------- pure-JAX reference -------------------------

def decoder_layer_ref(x, enc, p, *, n_heads, dim_attn):
    H, A = n_heads, dim_attn
    B, S, D = x.shape
    bf16, f32 = jnp.bfloat16, jnp.float32

    def ln(v, g, b):
        mu = v.mean(-1, keepdims=True)
        var = ((v - mu) ** 2).mean(-1, keepdims=True)
        return (v - mu) / jnp.sqrt(var + LN_EPS) * g + b

    def mm(a, w):
        return jnp.dot(a.astype(bf16), w, preferred_element_type=f32)

    def mha(q_in, kv_in, wq, wk, wv, wo):
        Sq, Skv = q_in.shape[1], kv_in.shape[1]
        q = mm(q_in.reshape(B * Sq, D), wq).reshape(B, Sq, H, A)
        k = mm(kv_in.reshape(B * Skv, D), wk).reshape(B, Skv, H, A)
        v = mm(kv_in.reshape(B * Skv, D), wv).reshape(B, Skv, H, D)
        s = jnp.einsum("bqha,bkha->bhqk", q.astype(bf16), k.astype(bf16),
                       preferred_element_type=f32) / jnp.sqrt(f32(A))
        pr = jax.nn.softmax(s, axis=-1)
        heads = jnp.einsum("bhqk,bkhd->bqhd", pr.astype(bf16), v.astype(bf16),
                           preferred_element_type=f32)
        return mm(heads.reshape(B * Sq, H * D), wo).reshape(B, Sq, D)

    sp = p["small"]
    bfc1, bfc2 = sp[0:1], sp[1:2]
    g1, b1 = sp[2:3], sp[3:4]
    g2, b2 = sp[4:5], sp[5:6]
    g3, b3 = sp[6:7], sp[7:8]

    a = mha(x, x, p["wq1"], p["wk1"], p["wv1"], p["wo1"])
    xc = ln(a + x, g1, b1)
    a = mha(xc, enc, p["wq2"], p["wk2"], p["wv2"], p["wo2"])
    xc = ln(a + xc, g2, b2)
    h = mm(xc.reshape(B * S, D), p["wfc2"]).reshape(B, S, D) + bfc2
    h = jnp.where(h > 0, h, jnp.exp(h) - 1.0)
    a = mm(h.reshape(B * S, D), p["wfc1"]).reshape(B, S, D) + bfc1
    xc = ln(xc + a, g3, b3)
    return xc


# ------------------------- deterministic params -------------------------

def init_params(key, D, A, H):
    ks = jax.random.split(key, 16)
    s = 0.2
    f32, bf16 = jnp.float32, jnp.bfloat16

    def w(k, shape):  # matmul weights stored in bf16 (fused head layout)
        return (jax.random.normal(k, shape, f32) * s).astype(bf16)

    p = {
        "wq1": w(ks[0], (D, H * A)),
        "wk1": w(ks[1], (D, H * A)),
        "wv1": w(ks[2], (D, H * D)),
        "wo1": w(ks[3], (H * D, D)),
        "wq2": w(ks[4], (D, H * A)),
        "wk2": w(ks[5], (D, H * A)),
        "wv2": w(ks[6], (D, H * D)),
        "wo2": w(ks[7], (H * D, D)),
        "wfc1": w(ks[8], (D, D)),
        "wfc2": w(ks[9], (D, D)),
    }
    # Packed small params: [bfc1, bfc2, g1, b1, g2, b2, g3, b3]  -> (8, D) f32
    p["small"] = jnp.concatenate([
        jax.random.normal(ks[10], (1, D), f32) * s,            # bfc1
        jax.random.normal(ks[11], (1, D), f32) * s,            # bfc2
        1.0 + 0.1 * jax.random.normal(ks[12], (1, D), f32),    # g1
        0.1 * jax.random.normal(ks[13], (1, D), f32),          # b1
        1.0 + 0.1 * jax.random.normal(ks[14], (1, D), f32),    # g2
        0.1 * jax.random.normal(ks[15], (1, D), f32),          # b2
        jnp.ones((1, D), f32),                                 # g3
        jnp.zeros((1, D), f32),                                # b3
    ], axis=0)
    return p


if __name__ == "__main__":
    # batch, dec seq, enc seq, dim_val, dim_attn, n_heads
    B, S, Se, D, A, H = 2, 8, 12, 32, 16, 2
    key = jax.random.PRNGKey(0)
    kx, ke, kp = jax.random.split(key, 3)
    x = jax.random.normal(kx, (B, S, D), jnp.float32)
    enc = jax.random.normal(ke, (B, Se, D), jnp.float32)
    params = init_params(kp, D, A, H)

    out = decoder_layer(x, enc, params, n_heads=H, dim_attn=A)
    out = jax.block_until_ready(out)

    ref = decoder_layer_ref(x, enc, params, n_heads=H, dim_attn=A)
    assert out.shape == (B, S, D)
    # bf16 matmul inputs + approx softmax reciprocal -> slightly relaxed tol.
    assert jnp.allclose(out, ref, atol=2e-2, rtol=2e-2), "kernel/ref mismatch"
    print("KERNEL_OK")
</pallas_src>

<mosaic_0001>
module attributes {stable_mosaic.version = 11 : i64} {
  func.func @kernel(%arg0: memref<2x8x32xf32, #tpu.memory_space<vmem>>, %arg1: memref<2x12x32xf32, #tpu.memory_space<vmem>>, %arg2: memref<32x32xbf16, #tpu.memory_space<vmem>>, %arg3: memref<32x32xbf16, #tpu.memory_space<vmem>>, %arg4: memref<32x64xbf16, #tpu.memory_space<vmem>>, %arg5: memref<64x32xbf16, #tpu.memory_space<vmem>>, %arg6: memref<32x32xbf16, #tpu.memory_space<vmem>>, %arg7: memref<32x32xbf16, #tpu.memory_space<vmem>>, %arg8: memref<32x64xbf16, #tpu.memory_space<vmem>>, %arg9: memref<64x32xbf16, #tpu.memory_space<vmem>>, %arg10: memref<32x32xbf16, #tpu.memory_space<vmem>>, %arg11: memref<32x32xbf16, #tpu.memory_space<vmem>>, %arg12: memref<8x32xf32, #tpu.memory_space<vmem>>, %arg13: memref<2x8x32xf32, #tpu.memory_space<vmem>>) attributes {dimension_semantics = [], scalar_prefetch = 0 : i64, scratch_operands = 0 : i64, tpu.core_type = #tpu.core_type<tc>} {
    %c0 = arith.constant 0 : index
    %c0_0 = arith.constant 0 : index
    %c0_1 = arith.constant 0 : index
    %0 = vector.load %arg0[%c0, %c0_0, %c0_1] : memref<2x8x32xf32, #tpu.memory_space<vmem>>, vector<2x8x32xf32>
    %1 = vector.shape_cast %0 : vector<2x8x32xf32> to vector<16x32xf32>
    %c0_2 = arith.constant 0 : index
    %c0_3 = arith.constant 0 : index
    %c0_4 = arith.constant 0 : index
    %2 = vector.load %arg1[%c0_2, %c0_3, %c0_4] : memref<2x12x32xf32, #tpu.memory_space<vmem>>, vector<2x12x32xf32>
    %3 = vector.shape_cast %2 : vector<2x12x32xf32> to vector<24x32xf32>
    %c0_5 = arith.constant 0 : index
    %c0_6 = arith.constant 0 : index
    %4 = vector.load %arg12[%c0_5, %c0_6] : memref<8x32xf32, #tpu.memory_space<vmem>>, vector<8x32xf32>
    %5 = vector.extract_strided_slice %4 {offsets = [0, 0], sizes = [1, 32], strides = [1, 1]} : vector<8x32xf32> to vector<1x32xf32>
    %6 = vector.extract_strided_slice %4 {offsets = [1, 0], sizes = [1, 32], strides = [1, 1]} : vector<8x32xf32> to vector<1x32xf32>
    %7 = vector.extract_strided_slice %4 {offsets = [2, 0], sizes = [1, 32], strides = [1, 1]} : vector<8x32xf32> to vector<1x32xf32>
    %8 = vector.extract_strided_slice %4 {offsets = [3, 0], sizes = [1, 32], strides = [1, 1]} : vector<8x32xf32> to vector<1x32xf32>
    %9 = vector.extract_strided_slice %4 {offsets = [4, 0], sizes = [1, 32], strides = [1, 1]} : vector<8x32xf32> to vector<1x32xf32>
    %10 = vector.extract_strided_slice %4 {offsets = [5, 0], sizes = [1, 32], strides = [1, 1]} : vector<8x32xf32> to vector<1x32xf32>
    %11 = vector.extract_strided_slice %4 {offsets = [6, 0], sizes = [1, 32], strides = [1, 1]} : vector<8x32xf32> to vector<1x32xf32>
    %12 = vector.extract_strided_slice %4 {offsets = [7, 0], sizes = [1, 32], strides = [1, 1]} : vector<8x32xf32> to vector<1x32xf32>
    %c0_7 = arith.constant 0 : index
    %c0_8 = arith.constant 0 : index
    %13 = vector.load %arg2[%c0_7, %c0_8] : memref<32x32xbf16, #tpu.memory_space<vmem>>, vector<32x32xbf16>
    %c0_9 = arith.constant 0 : index
    %c0_10 = arith.constant 0 : index
    %14 = vector.load %arg3[%c0_9, %c0_10] : memref<32x32xbf16, #tpu.memory_space<vmem>>, vector<32x32xbf16>
    %c0_11 = arith.constant 0 : index
    %c0_12 = arith.constant 0 : index
    %15 = vector.load %arg4[%c0_11, %c0_12] : memref<32x64xbf16, #tpu.memory_space<vmem>>, vector<32x64xbf16>
    %c0_13 = arith.constant 0 : index
    %c0_14 = arith.constant 0 : index
    %16 = vector.load %arg5[%c0_13, %c0_14] : memref<64x32xbf16, #tpu.memory_space<vmem>>, vector<64x32xbf16>
    %17 = arith.truncf %1 : vector<16x32xf32> to vector<16x32xbf16>
    %18 = arith.truncf %1 : vector<16x32xf32> to vector<16x32xbf16>
    %cst = arith.constant dense<0.000000e+00> : vector<16x32xf32>
    %19 = tpu.matmul %17, %13, %cst {dimension_numbers = #tpu.dot_dimension_numbers<[1], [0], [0], [1], [0, 0, 1, 1], [], []>} : vector<16x32xbf16>, vector<32x32xbf16>, vector<16x32xf32> -> vector<16x32xf32>
    %cst_15 = arith.constant dense<0.000000e+00> : vector<16x32xf32>
    %20 = tpu.matmul %18, %14, %cst_15 {dimension_numbers = #tpu.dot_dimension_numbers<[1], [0], [0], [1], [0, 0, 1, 1], [], []>} : vector<16x32xbf16>, vector<32x32xbf16>, vector<16x32xf32> -> vector<16x32xf32>
    %cst_16 = arith.constant dense<0.000000e+00> : vector<16x64xf32>
    %21 = tpu.matmul %18, %15, %cst_16 {dimension_numbers = #tpu.dot_dimension_numbers<[1], [0], [0], [1], [0, 0, 1, 1], [], []>} : vector<16x32xbf16>, vector<32x64xbf16>, vector<16x64xf32> -> vector<16x64xf32>
    %cst_17 = arith.constant 1.600000e+01 : f32
    %22 = math.sqrt %cst_17 : f32
    %cst_18 = arith.constant 1.000000e+00 : f32
    %23 = arith.divf %cst_18, %22 : f32
    %24 = vector.extract_strided_slice %19 {offsets = [0, 0], sizes = [8, 32], strides = [1, 1]} : vector<16x32xf32> to vector<8x32xf32>
    %25 = vector.extract_strided_slice %20 {offsets = [0, 0], sizes = [8, 32], strides = [1, 1]} : vector<16x32xf32> to vector<8x32xf32>
    %26 = vector.extract_strided_slice %21 {offsets = [0, 0], sizes = [8, 64], strides = [1, 1]} : vector<16x64xf32> to vector<8x64xf32>
    %27 = vector.extract_strided_slice %24 {offsets = [0, 0], sizes = [8, 16], strides = [1, 1]} : vector<8x32xf32> to vector<8x16xf32>
    %28 = arith.truncf %27 : vector<8x16xf32> to vector<8x16xbf16>
    %29 = vector.extract_strided_slice %25 {offsets = [0, 0], sizes = [8, 16], strides = [1, 1]} : vector<8x32xf32> to vector<8x16xf32>
    %30 = arith.truncf %29 : vector<8x16xf32> to vector<8x16xbf16>
    %31 = vector.extract_strided_slice %26 {offsets = [0, 0], sizes = [8, 32], strides = [1, 1]} : vector<8x64xf32> to vector<8x32xf32>
    %32 = arith.truncf %31 : vector<8x32xf32> to vector<8x32xbf16>
    %cst_19 = arith.constant dense<0.000000e+00> : vector<8x8xf32>
    %33 = tpu.matmul %28, %30, %cst_19 {dimension_numbers = #tpu.dot_dimension_numbers<[1], [1], [0], [0], [0, 0, 1, 0], [], []>} : vector<8x16xbf16>, vector<8x16xbf16>, vector<8x8xf32> -> vector<8x8xf32>
    %34 = vector.broadcast %23 : f32 to vector<8x8xf32>
    %35 = arith.mulf %33, %34 : vector<8x8xf32>
    %cst_20 = arith.constant dense<0xFF800000> : vector<8xf32>
    %36 = vector.multi_reduction <maximumf>, %35, %cst_20 [1] : vector<8x8xf32> to vector<8xf32>
    %37 = vector.shape_cast %36 : vector<8xf32> to vector<8x1xf32>
    %38 = vector.broadcast %37 : vector<8x1xf32> to vector<8x8xf32>
    %39 = arith.subf %35, %38 : vector<8x8xf32>
    %40 = math.exp %39 : vector<8x8xf32>
    %cst_21 = arith.constant dense<0.000000e+00> : vector<8xf32>
    %41 = vector.multi_reduction <add>, %40, %cst_21 [1] : vector<8x8xf32> to vector<8xf32>
    %42 = vector.shape_cast %41 : vector<8xf32> to vector<8x1xf32>
    %43 = tpu.reciprocal %42 {approx = true} : vector<8x1xf32> -> vector<8x1xf32>
    %44 = vector.broadcast %43 : vector<8x1xf32> to vector<8x8xf32>
    %45 = arith.mulf %40, %44 : vector<8x8xf32>
    %46 = arith.truncf %45 : vector<8x8xf32> to vector<8x8xbf16>
    %cst_22 = arith.constant dense<0.000000e+00> : vector<8x32xf32>
    %47 = tpu.matmul %46, %32, %cst_22 {dimension_numbers = #tpu.dot_dimension_numbers<[1], [0], [0], [1], [0, 0, 1, 1], [], []>} : vector<8x8xbf16>, vector<8x32xbf16>, vector<8x32xf32> -> vector<8x32xf32>
    %48 = vector.extract_strided_slice %24 {offsets = [0, 16], sizes = [8, 16], strides = [1, 1]} : vector<8x32xf32> to vector<8x16xf32>
    %49 = arith.truncf %48 : vector<8x16xf32> to vector<8x16xbf16>
    %50 = vector.extract_strided_slice %25 {offsets = [0, 16], sizes = [8, 16], strides = [1, 1]} : vector<8x32xf32> to vector<8x16xf32>
    %51 = arith.truncf %50 : vector<8x16xf32> to vector<8x16xbf16>
    %52 = vector.extract_strided_slice %26 {offsets = [0, 32], sizes = [8, 32], strides = [1, 1]} : vector<8x64xf32> to vector<8x32xf32>
    %53 = arith.truncf %52 : vector<8x32xf32> to vector<8x32xbf16>
    %cst_23 = arith.constant dense<0.000000e+00> : vector<8x8xf32>
    %54 = tpu.matmul %49, %51, %cst_23 {dimension_numbers = #tpu.dot_dimension_numbers<[1], [1], [0], [0], [0, 0, 1, 0], [], []>} : vector<8x16xbf16>, vector<8x16xbf16>, vector<8x8xf32> -> vector<8x8xf32>
    %55 = vector.broadcast %23 : f32 to vector<8x8xf32>
    %56 = arith.mulf %54, %55 : vector<8x8xf32>
    %cst_24 = arith.constant dense<0xFF800000> : vector<8xf32>
    %57 = vector.multi_reduction <maximumf>, %56, %cst_24 [1] : vector<8x8xf32> to vector<8xf32>
    %58 = vector.shape_cast %57 : vector<8xf32> to vector<8x1xf32>
    %59 = vector.broadcast %58 : vector<8x1xf32> to vector<8x8xf32>
    %60 = arith.subf %56, %59 : vector<8x8xf32>
    %61 = math.exp %60 : vector<8x8xf32>
    %cst_25 = arith.constant dense<0.000000e+00> : vector<8xf32>
    %62 = vector.multi_reduction <add>, %61, %cst_25 [1] : vector<8x8xf32> to vector<8xf32>
    %63 = vector.shape_cast %62 : vector<8xf32> to vector<8x1xf32>
    %64 = tpu.reciprocal %63 {approx = true} : vector<8x1xf32> -> vector<8x1xf32>
    %65 = vector.broadcast %64 : vector<8x1xf32> to vector<8x8xf32>
    %66 = arith.mulf %61, %65 : vector<8x8xf32>
    %67 = arith.truncf %66 : vector<8x8xf32> to vector<8x8xbf16>
    %cst_26 = arith.constant dense<0.000000e+00> : vector<8x32xf32>
    %68 = tpu.matmul %67, %53, %cst_26 {dimension_numbers = #tpu.dot_dimension_numbers<[1], [0], [0], [1], [0, 0, 1, 1], [], []>} : vector<8x8xbf16>, vector<8x32xbf16>, vector<8x32xf32> -> vector<8x32xf32>
    %69 = tpu.concatenate %47, %68 in 1 : vector<8x32xf32>, vector<8x32xf32> -> vector<8x64xf32>
    %70 = vector.extract_strided_slice %19 {offsets = [8, 0], sizes = [8, 32], strides = [1, 1]} : vector<16x32xf32> to vector<8x32xf32>
    %71 = vector.extract_strided_slice %20 {offsets = [8, 0], sizes = [8, 32], strides = [1, 1]} : vector<16x32xf32> to vector<8x32xf32>
    %72 = vector.extract_strided_slice %21 {offsets = [8, 0], sizes = [8, 64], strides = [1, 1]} : vector<16x64xf32> to vector<8x64xf32>
    %73 = vector.extract_strided_slice %70 {offsets = [0, 0], sizes = [8, 16], strides = [1, 1]} : vector<8x32xf32> to vector<8x16xf32>
    %74 = arith.truncf %73 : vector<8x16xf32> to vector<8x16xbf16>
    %75 = vector.extract_strided_slice %71 {offsets = [0, 0], sizes = [8, 16], strides = [1, 1]} : vector<8x32xf32> to vector<8x16xf32>
    %76 = arith.truncf %75 : vector<8x16xf32> to vector<8x16xbf16>
    %77 = vector.extract_strided_slice %72 {offsets = [0, 0], sizes = [8, 32], strides = [1, 1]} : vector<8x64xf32> to vector<8x32xf32>
    %78 = arith.truncf %77 : vector<8x32xf32> to vector<8x32xbf16>
    %cst_27 = arith.constant dense<0.000000e+00> : vector<8x8xf32>
    %79 = tpu.matmul %74, %76, %cst_27 {dimension_numbers = #tpu.dot_dimension_numbers<[1], [1], [0], [0], [0, 0, 1, 0], [], []>} : vector<8x16xbf16>, vector<8x16xbf16>, vector<8x8xf32> -> vector<8x8xf32>
    %80 = vector.broadcast %23 : f32 to vector<8x8xf32>
    %81 = arith.mulf %79, %80 : vector<8x8xf32>
    %cst_28 = arith.constant dense<0xFF800000> : vector<8xf32>
    %82 = vector.multi_reduction <maximumf>, %81, %cst_28 [1] : vector<8x8xf32> to vector<8xf32>
    %83 = vector.shape_cast %82 : vector<8xf32> to vector<8x1xf32>
    %84 = vector.broadcast %83 : vector<8x1xf32> to vector<8x8xf32>
    %85 = arith.subf %81, %84 : vector<8x8xf32>
    %86 = math.exp %85 : vector<8x8xf32>
    %cst_29 = arith.constant dense<0.000000e+00> : vector<8xf32>
    %87 = vector.multi_reduction <add>, %86, %cst_29 [1] : vector<8x8xf32> to vector<8xf32>
    %88 = vector.shape_cast %87 : vector<8xf32> to vector<8x1xf32>
    %89 = tpu.reciprocal %88 {approx = true} : vector<8x1xf32> -> vector<8x1xf32>
    %90 = vector.broadcast %89 : vector<8x1xf32> to vector<8x8xf32>
    %91 = arith.mulf %86, %90 : vector<8x8xf32>
    %92 = arith.truncf %91 : vector<8x8xf32> to vector<8x8xbf16>
    %cst_30 = arith.constant dense<0.000000e+00> : vector<8x32xf32>
    %93 = tpu.matmul %92, %78, %cst_30 {dimension_numbers = #tpu.dot_dimension_numbers<[1], [0], [0], [1], [0, 0, 1, 1], [], []>} : vector<8x8xbf16>, vector<8x32xbf16>, vector<8x32xf32> -> vector<8x32xf32>
    %94 = vector.extract_strided_slice %70 {offsets = [0, 16], sizes = [8, 16], strides = [1, 1]} : vector<8x32xf32> to vector<8x16xf32>
    %95 = arith.truncf %94 : vector<8x16xf32> to vector<8x16xbf16>
    %96 = vector.extract_strided_slice %71 {offsets = [0, 16], sizes = [8, 16], strides = [1, 1]} : vector<8x32xf32> to vector<8x16xf32>
    %97 = arith.truncf %96 : vector<8x16xf32> to vector<8x16xbf16>
    %98 = vector.extract_strided_slice %72 {offsets = [0, 32], sizes = [8, 32], strides = [1, 1]} : vector<8x64xf32> to vector<8x32xf32>
    %99 = arith.truncf %98 : vector<8x32xf32> to vector<8x32xbf16>
    %cst_31 = arith.constant dense<0.000000e+00> : vector<8x8xf32>
    %100 = tpu.matmul %95, %97, %cst_31 {dimension_numbers = #tpu.dot_dimension_numbers<[1], [1], [0], [0], [0, 0, 1, 0], [], []>} : vector<8x16xbf16>, vector<8x16xbf16>, vector<8x8xf32> -> vector<8x8xf32>
    %101 = vector.broadcast %23 : f32 to vector<8x8xf32>
    %102 = arith.mulf %100, %101 : vector<8x8xf32>
    %cst_32 = arith.constant dense<0xFF800000> : vector<8xf32>
    %103 = vector.multi_reduction <maximumf>, %102, %cst_32 [1] : vector<8x8xf32> to vector<8xf32>
    %104 = vector.shape_cast %103 : vector<8xf32> to vector<8x1xf32>
    %105 = vector.broadcast %104 : vector<8x1xf32> to vector<8x8xf32>
    %106 = arith.subf %102, %105 : vector<8x8xf32>
    %107 = math.exp %106 : vector<8x8xf32>
    %cst_33 = arith.constant dense<0.000000e+00> : vector<8xf32>
    %108 = vector.multi_reduction <add>, %107, %cst_33 [1] : vector<8x8xf32> to vector<8xf32>
    %109 = vector.shape_cast %108 : vector<8xf32> to vector<8x1xf32>
    %110 = tpu.reciprocal %109 {approx = true} : vector<8x1xf32> -> vector<8x1xf32>
    %111 = vector.broadcast %110 : vector<8x1xf32> to vector<8x8xf32>
    %112 = arith.mulf %107, %111 : vector<8x8xf32>
    %113 = arith.truncf %112 : vector<8x8xf32> to vector<8x8xbf16>
    %cst_34 = arith.constant dense<0.000000e+00> : vector<8x32xf32>
    %114 = tpu.matmul %113, %99, %cst_34 {dimension_numbers = #tpu.dot_dimension_numbers<[1], [0], [0], [1], [0, 0, 1, 1], [], []>} : vector<8x8xbf16>, vector<8x32xbf16>, vector<8x32xf32> -> vector<8x32xf32>
    %115 = tpu.concatenate %93, %114 in 1 : vector<8x32xf32>, vector<8x32xf32> -> vector<8x64xf32>
    %116 = tpu.concatenate %69, %115 in 0 : vector<8x64xf32>, vector<8x64xf32> -> vector<16x64xf32>
    %117 = arith.truncf %116 : vector<16x64xf32> to vector<16x64xbf16>
    %cst_35 = arith.constant dense<0.000000e+00> : vector<16x32xf32>
    %118 = tpu.matmul %117, %16, %cst_35 {dimension_numbers = #tpu.dot_dimension_numbers<[1], [0], [0], [1], [0, 0, 1, 1], [], []>} : vector<16x64xbf16>, vector<64x32xbf16>, vector<16x32xf32> -> vector<16x32xf32>
    %119 = arith.addf %118, %1 : vector<16x32xf32>
    %cst_36 = arith.constant dense<0.000000e+00> : vector<16xf32>
    %120 = vector.multi_reduction <add>, %119, %cst_36 [1] : vector<16x32xf32> to vector<16xf32>
    %121 = vector.shape_cast %120 : vector<16xf32> to vector<16x1xf32>
    %cst_37 = arith.constant 3.200000e+01 : f32
    %122 = vector.broadcast %cst_37 : f32 to vector<16x1xf32>
    %123 = arith.divf %121, %122 : vector<16x1xf32>
    %124 = vector.broadcast %123 : vector<16x1xf32> to vector<16x32xf32>
    %125 = arith.subf %119, %124 : vector<16x32xf32>
    %126 = arith.mulf %125, %125 : vector<16x32xf32>
    %cst_38 = arith.constant dense<0.000000e+00> : vector<16xf32>
    %127 = vector.multi_reduction <add>, %126, %cst_38 [1] : vector<16x32xf32> to vector<16xf32>
    %128 = vector.shape_cast %127 : vector<16xf32> to vector<16x1xf32>
    %cst_39 = arith.constant 3.200000e+01 : f32
    %129 = vector.broadcast %cst_39 : f32 to vector<16x1xf32>
    %130 = arith.divf %128, %129 : vector<16x1xf32>
    %131 = vector.broadcast %123 : vector<16x1xf32> to vector<16x32xf32>
    %132 = arith.subf %119, %131 : vector<16x32xf32>
    %cst_40 = arith.constant 9.99999974E-6 : f32
    %133 = vector.broadcast %cst_40 : f32 to vector<16x1xf32>
    %134 = arith.addf %130, %133 : vector<16x1xf32>
    %135 = math.rsqrt %134 : vector<16x1xf32>
    %136 = vector.broadcast %135 : vector<16x1xf32> to vector<16x32xf32>
    %137 = arith.mulf %132, %136 : vector<16x32xf32>
    %138 = vector.broadcast %7 : vector<1x32xf32> to vector<16x32xf32>
    %139 = arith.mulf %137, %138 : vector<16x32xf32>
    %140 = vector.broadcast %8 : vector<1x32xf32> to vector<16x32xf32>
    %141 = arith.addf %139, %140 : vector<16x32xf32>
    %c0_41 = arith.constant 0 : index
    %c0_42 = arith.constant 0 : index
    %142 = vector.load %arg6[%c0_41, %c0_42] : memref<32x32xbf16, #tpu.memory_space<vmem>>, vector<32x32xbf16>
    %c0_43 = arith.constant 0 : index
    %c0_44 = arith.constant 0 : index
    %143 = vector.load %arg7[%c0_43, %c0_44] : memref<32x32xbf16, #tpu.memory_space<vmem>>, vector<32x32xbf16>
    %c0_45 = arith.constant 0 : index
    %c0_46 = arith.constant 0 : index
    %144 = vector.load %arg8[%c0_45, %c0_46] : memref<32x64xbf16, #tpu.memory_space<vmem>>, vector<32x64xbf16>
    %c0_47 = arith.constant 0 : index
    %c0_48 = arith.constant 0 : index
    %145 = vector.load %arg9[%c0_47, %c0_48] : memref<64x32xbf16, #tpu.memory_space<vmem>>, vector<64x32xbf16>
    %146 = arith.truncf %141 : vector<16x32xf32> to vector<16x32xbf16>
    %147 = arith.truncf %3 : vector<24x32xf32> to vector<24x32xbf16>
    %cst_49 = arith.constant dense<0.000000e+00> : vector<16x32xf32>
    %148 = tpu.matmul %146, %142, %cst_49 {dimension_numbers = #tpu.dot_dimension_numbers<[1], [0], [0], [1], [0, 0, 1, 1], [], []>} : vector<16x32xbf16>, vector<32x32xbf16>, vector<16x32xf32> -> vector<16x32xf32>
    %cst_50 = arith.constant dense<0.000000e+00> : vector<24x32xf32>
    %149 = tpu.matmul %147, %143, %cst_50 {dimension_numbers = #tpu.dot_dimension_numbers<[1], [0], [0], [1], [0, 0, 1, 1], [], []>} : vector<24x32xbf16>, vector<32x32xbf16>, vector<24x32xf32> -> vector<24x32xf32>
    %cst_51 = arith.constant dense<0.000000e+00> : vector<24x64xf32>
    %150 = tpu.matmul %147, %144, %cst_51 {dimension_numbers = #tpu.dot_dimension_numbers<[1], [0], [0], [1], [0, 0, 1, 1], [], []>} : vector<24x32xbf16>, vector<32x64xbf16>, vector<24x64xf32> -> vector<24x64xf32>
    %cst_52 = arith.constant 1.600000e+01 : f32
    %151 = math.sqrt %cst_52 : f32
    %cst_53 = arith.constant 1.000000e+00 : f32
    %152 = arith.divf %cst_53, %151 : f32
    %153 = vector.extract_strided_slice %148 {offsets = [0, 0], sizes = [8, 32], strides = [1, 1]} : vector<16x32xf32> to vector<8x32xf32>
    %154 = vector.extract_strided_slice %149 {offsets = [0, 0], sizes = [12, 32], strides = [1, 1]} : vector<24x32xf32> to vector<12x32xf32>
    %155 = vector.extract_strided_slice %150 {offsets = [0, 0], sizes = [12, 64], strides = [1, 1]} : vector<24x64xf32> to vector<12x64xf32>
    %156 = vector.extract_strided_slice %153 {offsets = [0, 0], sizes = [8, 16], strides = [1, 1]} : vector<8x32xf32> to vector<8x16xf32>
    %157 = arith.truncf %156 : vector<8x16xf32> to vector<8x16xbf16>
    %158 = vector.extract_strided_slice %154 {offsets = [0, 0], sizes = [12, 16], strides = [1, 1]} : vector<12x32xf32> to vector<12x16xf32>
    %159 = arith.truncf %158 : vector<12x16xf32> to vector<12x16xbf16>
    %160 = vector.extract_strided_slice %155 {offsets = [0, 0], sizes = [12, 32], strides = [1, 1]} : vector<12x64xf32> to vector<12x32xf32>
    %161 = arith.truncf %160 : vector<12x32xf32> to vector<12x32xbf16>
    %cst_54 = arith.constant dense<0.000000e+00> : vector<8x12xf32>
    %162 = tpu.matmul %157, %159, %cst_54 {dimension_numbers = #tpu.dot_dimension_numbers<[1], [1], [0], [0], [0, 0, 1, 0], [], []>} : vector<8x16xbf16>, vector<12x16xbf16>, vector<8x12xf32> -> vector<8x12xf32>
    %163 = vector.broadcast %152 : f32 to vector<8x12xf32>
    %164 = arith.mulf %162, %163 : vector<8x12xf32>
    %cst_55 = arith.constant dense<0xFF800000> : vector<8xf32>
    %165 = vector.multi_reduction <maximumf>, %164, %cst_55 [1] : vector<8x12xf32> to vector<8xf32>
    %166 = vector.shape_cast %165 : vector<8xf32> to vector<8x1xf32>
    %167 = vector.broadcast %166 : vector<8x1xf32> to vector<8x12xf32>
    %168 = arith.subf %164, %167 : vector<8x12xf32>
    %169 = math.exp %168 : vector<8x12xf32>
    %cst_56 = arith.constant dense<0.000000e+00> : vector<8xf32>
    %170 = vector.multi_reduction <add>, %169, %cst_56 [1] : vector<8x12xf32> to vector<8xf32>
    %171 = vector.shape_cast %170 : vector<8xf32> to vector<8x1xf32>
    %172 = tpu.reciprocal %171 {approx = true} : vector<8x1xf32> -> vector<8x1xf32>
    %173 = vector.broadcast %172 : vector<8x1xf32> to vector<8x12xf32>
    %174 = arith.mulf %169, %173 : vector<8x12xf32>
    %175 = arith.truncf %174 : vector<8x12xf32> to vector<8x12xbf16>
    %cst_57 = arith.constant dense<0.000000e+00> : vector<8x32xf32>
    %176 = tpu.matmul %175, %161, %cst_57 {dimension_numbers = #tpu.dot_dimension_numbers<[1], [0], [0], [1], [0, 0, 1, 1], [], []>} : vector<8x12xbf16>, vector<12x32xbf16>, vector<8x32xf32> -> vector<8x32xf32>
    %177 = vector.extract_strided_slice %153 {offsets = [0, 16], sizes = [8, 16], strides = [1, 1]} : vector<8x32xf32> to vector<8x16xf32>
    %178 = arith.truncf %177 : vector<8x16xf32> to vector<8x16xbf16>
    %179 = vector.extract_strided_slice %154 {offsets = [0, 16], sizes = [12, 16], strides = [1, 1]} : vector<12x32xf32> to vector<12x16xf32>
    %180 = arith.truncf %179 : vector<12x16xf32> to vector<12x16xbf16>
    %181 = vector.extract_strided_slice %155 {offsets = [0, 32], sizes = [12, 32], strides = [1, 1]} : vector<12x64xf32> to vector<12x32xf32>
    %182 = arith.truncf %181 : vector<12x32xf32> to vector<12x32xbf16>
    %cst_58 = arith.constant dense<0.000000e+00> : vector<8x12xf32>
    %183 = tpu.matmul %178, %180, %cst_58 {dimension_numbers = #tpu.dot_dimension_numbers<[1], [1], [0], [0], [0, 0, 1, 0], [], []>} : vector<8x16xbf16>, vector<12x16xbf16>, vector<8x12xf32> -> vector<8x12xf32>
    %184 = vector.broadcast %152 : f32 to vector<8x12xf32>
    %185 = arith.mulf %183, %184 : vector<8x12xf32>
    %cst_59 = arith.constant dense<0xFF800000> : vector<8xf32>
    %186 = vector.multi_reduction <maximumf>, %185, %cst_59 [1] : vector<8x12xf32> to vector<8xf32>
    %187 = vector.shape_cast %186 : vector<8xf32> to vector<8x1xf32>
    %188 = vector.broadcast %187 : vector<8x1xf32> to vector<8x12xf32>
    %189 = arith.subf %185, %188 : vector<8x12xf32>
    %190 = math.exp %189 : vector<8x12xf32>
    %cst_60 = arith.constant dense<0.000000e+00> : vector<8xf32>
    %191 = vector.multi_reduction <add>, %190, %cst_60 [1] : vector<8x12xf32> to vector<8xf32>
    %192 = vector.shape_cast %191 : vector<8xf32> to vector<8x1xf32>
    %193 = tpu.reciprocal %192 {approx = true} : vector<8x1xf32> -> vector<8x1xf32>
    %194 = vector.broadcast %193 : vector<8x1xf32> to vector<8x12xf32>
    %195 = arith.mulf %190, %194 : vector<8x12xf32>
    %196 = arith.truncf %195 : vector<8x12xf32> to vector<8x12xbf16>
    %cst_61 = arith.constant dense<0.000000e+00> : vector<8x32xf32>
    %197 = tpu.matmul %196, %182, %cst_61 {dimension_numbers = #tpu.dot_dimension_numbers<[1], [0], [0], [1], [0, 0, 1, 1], [], []>} : vector<8x12xbf16>, vector<12x32xbf16>, vector<8x32xf32> -> vector<8x32xf32>
    %198 = tpu.concatenate %176, %197 in 1 : vector<8x32xf32>, vector<8x32xf32> -> vector<8x64xf32>
    %199 = vector.extract_strided_slice %148 {offsets = [8, 0], sizes = [8, 32], strides = [1, 1]} : vector<16x32xf32> to vector<8x32xf32>
    %200 = vector.extract_strided_slice %149 {offsets = [12, 0], sizes = [12, 32], strides = [1, 1]} : vector<24x32xf32> to vector<12x32xf32>
    %201 = vector.extract_strided_slice %150 {offsets = [12, 0], sizes = [12, 64], strides = [1, 1]} : vector<24x64xf32> to vector<12x64xf32>
    %202 = vector.extract_strided_slice %199 {offsets = [0, 0], sizes = [8, 16], strides = [1, 1]} : vector<8x32xf32> to vector<8x16xf32>
    %203 = arith.truncf %202 : vector<8x16xf32> to vector<8x16xbf16>
    %204 = vector.extract_strided_slice %200 {offsets = [0, 0], sizes = [12, 16], strides = [1, 1]} : vector<12x32xf32> to vector<12x16xf32>
    %205 = arith.truncf %204 : vector<12x16xf32> to vector<12x16xbf16>
    %206 = vector.extract_strided_slice %201 {offsets = [0, 0], sizes = [12, 32], strides = [1, 1]} : vector<12x64xf32> to vector<12x32xf32>
    %207 = arith.truncf %206 : vector<12x32xf32> to vector<12x32xbf16>
    %cst_62 = arith.constant dense<0.000000e+00> : vector<8x12xf32>
    %208 = tpu.matmul %203, %205, %cst_62 {dimension_numbers = #tpu.dot_dimension_numbers<[1], [1], [0], [0], [0, 0, 1, 0], [], []>} : vector<8x16xbf16>, vector<12x16xbf16>, vector<8x12xf32> -> vector<8x12xf32>
    %209 = vector.broadcast %152 : f32 to vector<8x12xf32>
    %210 = arith.mulf %208, %209 : vector<8x12xf32>
    %cst_63 = arith.constant dense<0xFF800000> : vector<8xf32>
    %211 = vector.multi_reduction <maximumf>, %210, %cst_63 [1] : vector<8x12xf32> to vector<8xf32>
    %212 = vector.shape_cast %211 : vector<8xf32> to vector<8x1xf32>
    %213 = vector.broadcast %212 : vector<8x1xf32> to vector<8x12xf32>
    %214 = arith.subf %210, %213 : vector<8x12xf32>
    %215 = math.exp %214 : vector<8x12xf32>
    %cst_64 = arith.constant dense<0.000000e+00> : vector<8xf32>
    %216 = vector.multi_reduction <add>, %215, %cst_64 [1] : vector<8x12xf32> to vector<8xf32>
    %217 = vector.shape_cast %216 : vector<8xf32> to vector<8x1xf32>
    %218 = tpu.reciprocal %217 {approx = true} : vector<8x1xf32> -> vector<8x1xf32>
    %219 = vector.broadcast %218 : vector<8x1xf32> to vector<8x12xf32>
    %220 = arith.mulf %215, %219 : vector<8x12xf32>
    %221 = arith.truncf %220 : vector<8x12xf32> to vector<8x12xbf16>
    %cst_65 = arith.constant dense<0.000000e+00> : vector<8x32xf32>
    %222 = tpu.matmul %221, %207, %cst_65 {dimension_numbers = #tpu.dot_dimension_numbers<[1], [0], [0], [1], [0, 0, 1, 1], [], []>} : vector<8x12xbf16>, vector<12x32xbf16>, vector<8x32xf32> -> vector<8x32xf32>
    %223 = vector.extract_strided_slice %199 {offsets = [0, 16], sizes = [8, 16], strides = [1, 1]} : vector<8x32xf32> to vector<8x16xf32>
    %224 = arith.truncf %223 : vector<8x16xf32> to vector<8x16xbf16>
    %225 = vector.extract_strided_slice %200 {offsets = [0, 16], sizes = [12, 16], strides = [1, 1]} : vector<12x32xf32> to vector<12x16xf32>
    %226 = arith.truncf %225 : vector<12x16xf32> to vector<12x16xbf16>
    %227 = vector.extract_strided_slice %201 {offsets = [0, 32], sizes = [12, 32], strides = [1, 1]} : vector<12x64xf32> to vector<12x32xf32>
    %228 = arith.truncf %227 : vector<12x32xf32> to vector<12x32xbf16>
    %cst_66 = arith.constant dense<0.000000e+00> : vector<8x12xf32>
    %229 = tpu.matmul %224, %226, %cst_66 {dimension_numbers = #tpu.dot_dimension_numbers<[1], [1], [0], [0], [0, 0, 1, 0], [], []>} : vector<8x16xbf16>, vector<12x16xbf16>, vector<8x12xf32> -> vector<8x12xf32>
    %230 = vector.broadcast %152 : f32 to vector<8x12xf32>
    %231 = arith.mulf %229, %230 : vector<8x12xf32>
    %cst_67 = arith.constant dense<0xFF800000> : vector<8xf32>
    %232 = vector.multi_reduction <maximumf>, %231, %cst_67 [1] : vector<8x12xf32> to vector<8xf32>
    %233 = vector.shape_cast %232 : vector<8xf32> to vector<8x1xf32>
    %234 = vector.broadcast %233 : vector<8x1xf32> to vector<8x12xf32>
    %235 = arith.subf %231, %234 : vector<8x12xf32>
    %236 = math.exp %235 : vector<8x12xf32>
    %cst_68 = arith.constant dense<0.000000e+00> : vector<8xf32>
    %237 = vector.multi_reduction <add>, %236, %cst_68 [1] : vector<8x12xf32> to vector<8xf32>
    %238 = vector.shape_cast %237 : vector<8xf32> to vector<8x1xf32>
    %239 = tpu.reciprocal %238 {approx = true} : vector<8x1xf32> -> vector<8x1xf32>
    %240 = vector.broadcast %239 : vector<8x1xf32> to vector<8x12xf32>
    %241 = arith.mulf %236, %240 : vector<8x12xf32>
    %242 = arith.truncf %241 : vector<8x12xf32> to vector<8x12xbf16>
    %cst_69 = arith.constant dense<0.000000e+00> : vector<8x32xf32>
    %243 = tpu.matmul %242, %228, %cst_69 {dimension_numbers = #tpu.dot_dimension_numbers<[1], [0], [0], [1], [0, 0, 1, 1], [], []>} : vector<8x12xbf16>, vector<12x32xbf16>, vector<8x32xf32> -> vector<8x32xf32>
    %244 = tpu.concatenate %222, %243 in 1 : vector<8x32xf32>, vector<8x32xf32> -> vector<8x64xf32>
    %245 = tpu.concatenate %198, %244 in 0 : vector<8x64xf32>, vector<8x64xf32> -> vector<16x64xf32>
    %246 = arith.truncf %245 : vector<16x64xf32> to vector<16x64xbf16>
    %cst_70 = arith.constant dense<0.000000e+00> : vector<16x32xf32>
    %247 = tpu.matmul %246, %145, %cst_70 {dimension_numbers = #tpu.dot_dimension_numbers<[1], [0], [0], [1], [0, 0, 1, 1], [], []>} : vector<16x64xbf16>, vector<64x32xbf16>, vector<16x32xf32> -> vector<16x32xf32>
    %248 = arith.addf %247, %141 : vector<16x32xf32>
    %cst_71 = arith.constant dense<0.000000e+00> : vector<16xf32>
    %249 = vector.multi_reduction <add>, %248, %cst_71 [1] : vector<16x32xf32> to vector<16xf32>
    %250 = vector.shape_cast %249 : vector<16xf32> to vector<16x1xf32>
    %cst_72 = arith.constant 3.200000e+01 : f32
    %251 = vector.broadcast %cst_72 : f32 to vector<16x1xf32>
    %252 = arith.divf %250, %251 : vector<16x1xf32>
    %253 = vector.broadcast %252 : vector<16x1xf32> to vector<16x32xf32>
    %254 = arith.subf %248, %253 : vector<16x32xf32>
    %255 = arith.mulf %254, %254 : vector<16x32xf32>
    %cst_73 = arith.constant dense<0.000000e+00> : vector<16xf32>
    %256 = vector.multi_reduction <add>, %255, %cst_73 [1] : vector<16x32xf32> to vector<16xf32>
    %257 = vector.shape_cast %256 : vector<16xf32> to vector<16x1xf32>
    %cst_74 = arith.constant 3.200000e+01 : f32
    %258 = vector.broadcast %cst_74 : f32 to vector<16x1xf32>
    %259 = arith.divf %257, %258 : vector<16x1xf32>
    %260 = vector.broadcast %252 : vector<16x1xf32> to vector<16x32xf32>
    %261 = arith.subf %248, %260 : vector<16x32xf32>
    %cst_75 = arith.constant 9.99999974E-6 : f32
    %262 = vector.broadcast %cst_75 : f32 to vector<16x1xf32>
    %263 = arith.addf %259, %262 : vector<16x1xf32>
    %264 = math.rsqrt %263 : vector<16x1xf32>
    %265 = vector.broadcast %264 : vector<16x1xf32> to vector<16x32xf32>
    %266 = arith.mulf %261, %265 : vector<16x32xf32>
    %267 = vector.broadcast %9 : vector<1x32xf32> to vector<16x32xf32>
    %268 = arith.mulf %266, %267 : vector<16x32xf32>
    %269 = vector.broadcast %10 : vector<1x32xf32> to vector<16x32xf32>
    %270 = arith.addf %268, %269 : vector<16x32xf32>
    %271 = arith.truncf %270 : vector<16x32xf32> to vector<16x32xbf16>
    %c0_76 = arith.constant 0 : index
    %c0_77 = arith.constant 0 : index
    %272 = vector.load %arg11[%c0_76, %c0_77] : memref<32x32xbf16, #tpu.memory_space<vmem>>, vector<32x32xbf16>
    %cst_78 = arith.constant dense<0.000000e+00> : vector<16x32xf32>
    %273 = tpu.matmul %271, %272, %cst_78 {dimension_numbers = #tpu.dot_dimension_numbers<[1], [0], [0], [1], [0, 0, 1, 1], [], []>} : vector<16x32xbf16>, vector<32x32xbf16>, vector<16x32xf32> -> vector<16x32xf32>
    %274 = vector.broadcast %6 : vector<1x32xf32> to vector<16x32xf32>
    %275 = arith.addf %273, %274 : vector<16x32xf32>
    %cst_79 = arith.constant 0.000000e+00 : f32
    %276 = vector.broadcast %cst_79 : f32 to vector<16x32xf32>
    %277 = arith.cmpf ogt, %275, %276 : vector<16x32xf32>
    %278 = math.exp %275 : vector<16x32xf32>
    %cst_80 = arith.constant 1.000000e+00 : f32
    %279 = vector.broadcast %cst_80 : f32 to vector<16x32xf32>
    %280 = arith.subf %278, %279 : vector<16x32xf32>
    %281 = arith.select %277, %275, %280 : vector<16x32xi1>, vector<16x32xf32>
    %282 = arith.truncf %281 : vector<16x32xf32> to vector<16x32xbf16>
    %c0_81 = arith.constant 0 : index
    %c0_82 = arith.constant 0 : index
    %283 = vector.load %arg10[%c0_81, %c0_82] : memref<32x32xbf16, #tpu.memory_space<vmem>>, vector<32x32xbf16>
    %cst_83 = arith.constant dense<0.000000e+00> : vector<16x32xf32>
    %284 = tpu.matmul %282, %283, %cst_83 {dimension_numbers = #tpu.dot_dimension_numbers<[1], [0], [0], [1], [0, 0, 1, 1], [], []>} : vector<16x32xbf16>, vector<32x32xbf16>, vector<16x32xf32> -> vector<16x32xf32>
    %285 = vector.broadcast %5 : vector<1x32xf32> to vector<16x32xf32>
    %286 = arith.addf %284, %285 : vector<16x32xf32>
    %287 = arith.addf %270, %286 : vector<16x32xf32>
    %cst_84 = arith.constant dense<0.000000e+00> : vector<16xf32>
    %288 = vector.multi_reduction <add>, %287, %cst_84 [1] : vector<16x32xf32> to vector<16xf32>
    %289 = vector.shape_cast %288 : vector<16xf32> to vector<16x1xf32>
    %cst_85 = arith.constant 3.200000e+01 : f32
    %290 = vector.broadcast %cst_85 : f32 to vector<16x1xf32>
    %291 = arith.divf %289, %290 : vector<16x1xf32>
    %292 = vector.broadcast %291 : vector<16x1xf32> to vector<16x32xf32>
    %293 = arith.subf %287, %292 : vector<16x32xf32>
    %294 = arith.mulf %293, %293 : vector<16x32xf32>
    %cst_86 = arith.constant dense<0.000000e+00> : vector<16xf32>
    %295 = vector.multi_reduction <add>, %294, %cst_86 [1] : vector<16x32xf32> to vector<16xf32>
    %296 = vector.shape_cast %295 : vector<16xf32> to vector<16x1xf32>
    %cst_87 = arith.constant 3.200000e+01 : f32
    %297 = vector.broadcast %cst_87 : f32 to vector<16x1xf32>
    %298 = arith.divf %296, %297 : vector<16x1xf32>
    %299 = vector.broadcast %291 : vector<16x1xf32> to vector<16x32xf32>
    %300 = arith.subf %287, %299 : vector<16x32xf32>
    %cst_88 = arith.constant 9.99999974E-6 : f32
    %301 = vector.broadcast %cst_88 : f32 to vector<16x1xf32>
    %302 = arith.addf %298, %301 : vector<16x1xf32>
    %303 = math.rsqrt %302 : vector<16x1xf32>
    %304 = vector.broadcast %303 : vector<16x1xf32> to vector<16x32xf32>
    %305 = arith.mulf %300, %304 : vector<16x32xf32>
    %306 = vector.broadcast %11 : vector<1x32xf32> to vector<16x32xf32>
    %307 = arith.mulf %305, %306 : vector<16x32xf32>
    %308 = vector.broadcast %12 : vector<1x32xf32> to vector<16x32xf32>
    %309 = arith.addf %307, %308 : vector<16x32xf32>
    %310 = vector.shape_cast %309 : vector<16x32xf32> to vector<2x8x32xf32>
    %c0_89 = arith.constant 0 : index
    %c0_90 = arith.constant 0 : index
    %c0_91 = arith.constant 0 : index
    %311 = vector.load %arg13[%c0_89, %c0_90, %c0_91] : memref<2x8x32xf32, #tpu.memory_space<vmem>>, vector<2x8x32xf32>
    tpu.vector_store %arg13[%c0_89, %c0_90, %c0_91], %310 {strides = array<i32>} : memref<2x8x32xf32, #tpu.memory_space<vmem>>, vector<2x8x32xf32>,
    return
  }
}

</mosaic_0001>

<llo_original>
// kernel: tpu_custom_call.1
$region0: #{tpu_custom_call.1}
  #allocation0 [shape = 'u32[]', space=smem, size = 0x4, offset = 0x4, fixed_abs, tag = 'smem constant byte address 0x4 - core index']
  #allocation1 [shape = 'u32[144,128]{1,0:T(1,128)}', space=vmem, size = 0x12000, scoped, tag = 'internal scratch']
  %s0 = inlined_call_operand.vmem [shape: f32[2,8,32], index: 0, kind: input, shape index: {}]
  %s1 = inlined_call_operand.vmem [shape: f32[2,12,32], index: 1, kind: input, shape index: {}]
  %s2 = inlined_call_operand.vmem [shape: bf16[32,32], index: 2, kind: input, shape index: {}]
  %s3 = inlined_call_operand.vmem [shape: bf16[32,32], index: 3, kind: input, shape index: {}]
  %s4 = inlined_call_operand.vmem [shape: bf16[32,64], index: 4, kind: input, shape index: {}]
  %s5 = inlined_call_operand.vmem [shape: bf16[64,32], index: 5, kind: input, shape index: {}]
  %s6 = inlined_call_operand.vmem [shape: bf16[32,32], index: 6, kind: input, shape index: {}]
  %s7 = inlined_call_operand.vmem [shape: bf16[32,32], index: 7, kind: input, shape index: {}]
  %s8 = inlined_call_operand.vmem [shape: bf16[32,64], index: 8, kind: input, shape index: {}]
  %s9 = inlined_call_operand.vmem [shape: bf16[64,32], index: 9, kind: input, shape index: {}]
  %s10 = inlined_call_operand.vmem [shape: bf16[32,32], index: 10, kind: input, shape index: {}]
  %s11 = inlined_call_operand.hbm [shape: bf16[32,32], index: 11, kind: input, shape index: {}]
  %s12 = inlined_call_operand.vmem [shape: f32[8,32], index: 12, kind: input, shape index: {}]
  %s13 = inlined_call_operand.hbm [shape: f32[2,8,32], index: 13, kind: output, shape index: {}]
  %s14 = sld [smem:[#allocation0]]
  $region66: #{tpu_custom_call.1} parent=0
    _
  %s16 = ssub.s32 1, %s14
  %s17 = scalar_select 0, %s16, %s14
  $region1: #{tpu_custom_call.1} parent=0
    #allocation2 [shape = 'u8[8192]{0}', space=vmem, size = 0x2000, scoped, tag = 'input window, operand 11, single buffered']
    #allocation3 [shape = 's32[1]{0}', space=sflag, size = 0x4, scoped, tag = 'scoped memory for tpu_custom_call.1']
    #allocation4 [shape = 's32[1]{0}', space=sflag, size = 0x4, scoped, tag = 'scoped memory for tpu_custom_call.1']
    #allocation5 [shape = 'u8[8192]{0}', space=vmem, size = 0x2000, scoped, tag = 'output window, operand 0, single buffered']
    %18 = vsyncpa [#allocation3], 0
    %19 = vsyncpa [#allocation4], 0
    // Predicated region
    $region2: #{tpu_custom_call.1} parent=1 // pred_check
      _
    $region3: #{tpu_custom_call.1} parent=1 // pred_check_branch
      %21 = sbr.rel (0) target = $region5
    $region4: #{tpu_custom_call.1} parent=1 // pred_region
      _
    $region5: #{tpu_custom_call.1} parent=1 // pred_fallthru
      _
    // Predicated region
    $region6: #{tpu_custom_call.1} parent=1 // pred_check
      _
    $region7: #{tpu_custom_call.1} parent=1 // pred_check_branch
      %23 = sbr.rel (0) target = $region9
    $region8: #{tpu_custom_call.1} parent=1 // pred_region
      _
    $region9: #{tpu_custom_call.1} parent=1 // pred_fallthru
      _
    // Predicated region
    $region10: #{tpu_custom_call.1} parent=1 // pred_check
      _
    $region11: #{tpu_custom_call.1} parent=1 // pred_check_branch
      %25 = sbr.rel (0) target = $region13
    $region12: #{tpu_custom_call.1} parent=1 // pred_region
      _
    $region13: #{tpu_custom_call.1} parent=1 // pred_fallthru
      _
    // Predicated region
    $region14: #{tpu_custom_call.1} parent=1 // pred_check
      _
    $region15: #{tpu_custom_call.1} parent=1 // pred_check_branch
      %27 = sbr.rel (0) target = $region17
    $region16: #{tpu_custom_call.1} parent=1 // pred_region
      _
    $region17: #{tpu_custom_call.1} parent=1 // pred_fallthru
      _
    // Predicated region
    $region18: #{tpu_custom_call.1} parent=1 // pred_check
      _
    $region19: #{tpu_custom_call.1} parent=1 // pred_check_branch
      %29 = sbr.rel (0) target = $region21
    $region20: #{tpu_custom_call.1} parent=1 // pred_region
      _
    $region21: #{tpu_custom_call.1} parent=1 // pred_fallthru
      _
    // Predicated region
    $region22: #{tpu_custom_call.1} parent=1 // pred_check
      _
    $region23: #{tpu_custom_call.1} parent=1 // pred_check_branch
      %31 = sbr.rel (0) target = $region25
    $region24: #{tpu_custom_call.1} parent=1 // pred_region
      _
    $region25: #{tpu_custom_call.1} parent=1 // pred_fallthru
      _
    // Predicated region
    $region26: #{tpu_custom_call.1} parent=1 // pred_check
      _
    $region27: #{tpu_custom_call.1} parent=1 // pred_check_branch
      %33 = sbr.rel (0) target = $region29
    $region28: #{tpu_custom_call.1} parent=1 // pred_region
      _
    $region29: #{tpu_custom_call.1} parent=1 // pred_fallthru
      _
    // Predicated region
    $region30: #{tpu_custom_call.1} parent=1 // pred_check
      _
    $region31: #{tpu_custom_call.1} parent=1 // pred_check_branch
      %35 = sbr.rel (0) target = $region33
    $region32: #{tpu_custom_call.1} parent=1 // pred_region
      _
    $region33: #{tpu_custom_call.1} parent=1 // pred_fallthru
      _
    // Predicated region
    $region34: #{tpu_custom_call.1} parent=1 // pred_check
      _
    $region35: #{tpu_custom_call.1} parent=1 // pred_check_branch
      %37 = sbr.rel (0) target = $region37
    $region36: #{tpu_custom_call.1} parent=1 // pred_region
      _
    $region37: #{tpu_custom_call.1} parent=1 // pred_fallthru
      _
    // Predicated region
    $region38: #{tpu_custom_call.1} parent=1 // pred_check
      _
    $region39: #{tpu_custom_call.1} parent=1 // pred_check_branch
      %39 = sbr.rel (0) target = $region41
    $region40: #{tpu_custom_call.1} parent=1 // pred_region
      _
    $region41: #{tpu_custom_call.1} parent=1 // pred_fallthru
      _
    // Predicated region
    $region42: #{tpu_custom_call.1} parent=1 // pred_check
      _
    $region43: #{tpu_custom_call.1} parent=1 // pred_check_branch
      %41 = sbr.rel (0) target = $region45
    $region44: #{tpu_custom_call.1} parent=1 // pred_region
      _
    $region45: #{tpu_custom_call.1} parent=1 // pred_fallthru
      _
    // Predicated region
    $region46: #{tpu_custom_call.1} parent=1 // pred_check
      _
    $region47: #{tpu_custom_call.1} parent=1 // pred_check_branch
      %43 = sbr.rel (0) target = $region49
    $region48: #{tpu_custom_call.1} parent=1 // pred_region
      %s45 = ssub.s32 256, 256
      %46 = vsyncadd [#allocation3], %s45
      %s47 = sshll.u32 [#allocation2], 4
      %s48 = int_to_ptr.vmem [resolvable:$true] %s47
      %53 = dma.hbm_to_vmem [thread:$0]  %s11, 256, %s48, [#allocation3], 64, 64, 4
    $region49: #{tpu_custom_call.1} parent=1 // pred_fallthru
      _
    // Predicated region
    $region50: #{tpu_custom_call.1} parent=1 // pred_check
      _
    $region51: #{tpu_custom_call.1} parent=1 // pred_check_branch
      %55 = sbr.rel (0) target = $region53
    $region52: #{tpu_custom_call.1} parent=1 // pred_region
      _
    $region53: #{tpu_custom_call.1} parent=1 // pred_fallthru
      _
    // Predicated region
    $region54: #{tpu_custom_call.1} parent=1 // pred_check
      _
    $region55: #{tpu_custom_call.1} parent=1 // pred_check_branch
      %57 = sbr.rel (0) target = $region57
    $region56: #{tpu_custom_call.1} parent=1 // pred_region
      %58 = dma.done [#allocation3], 256
    $region57: #{tpu_custom_call.1} parent=1 // pred_fallthru
      _
    %v60 = vld [vmem:[%s0] sm:$0xff]
    %v61 = vld [vmem:[%s0 + $0x8] sm:$0xff]
    %v62 = vld [vmem:[%s1] sm:$0xff]
    %v63 = vld [vmem:[%s1 + $0x8] sm:$0xf]
    %v64 = vld [vmem:[%s1 + $0x10] sm:$0xff]
    %v65 = vld [vmem:[%s1 + $0x18] sm:$0xf]
    %v70 = vcombine.high %v62, %v62
    %v71 = vcombine.high %v64, %v64
    %v72 = vld [vmem:[%s12] sm:$0xff]
    %v73 = vld [vmem:[%s2] sm:$0xf]
    %v74 = vld [vmem:[%s2 + $0x4] sm:$0xf]
    %v75 = vld [vmem:[%s2 + $0x8] sm:$0xf]
    %v76 = vld [vmem:[%s2 + $0xc] sm:$0xf]
    %v77 = vld [vmem:[%s3] sm:$0xf]
    %v78 = vld [vmem:[%s3 + $0x4] sm:$0xf]
    %v79 = vld [vmem:[%s3 + $0x8] sm:$0xf]
    %v80 = vld [vmem:[%s3 + $0xc] sm:$0xf]
    %v81 = vld [vmem:[%s4] sm:$0xf]
    %v82 = vld [vmem:[%s4 + $0x4] sm:$0xf]
    %v83 = vld [vmem:[%s4 + $0x8] sm:$0xf]
    %v84 = vld [vmem:[%s4 + $0xc] sm:$0xf]
    %v85 = vld [vmem:[%s5] sm:$0xf]
    %v86 = vld [vmem:[%s5 + $0x4] sm:$0xf]
    %v87 = vld [vmem:[%s5 + $0x8] sm:$0xf]
    %v88 = vld [vmem:[%s5 + $0xc] sm:$0xf]
    %v89 = vld [vmem:[%s5 + $0x10] sm:$0xf]
    %v90 = vld [vmem:[%s5 + $0x14] sm:$0xf]
    %v91 = vld [vmem:[%s5 + $0x18] sm:$0xf]
    %v92 = vld [vmem:[%s5 + $0x1c] sm:$0xf]
    %v93 = vpack.c.bf16 %v61, %v60
    %v98 = vunpack.c.l.b16 %v73
    %v99 = vunpack.c.l.b16 %v74
    %v100 = vunpack.c.l.b16 %v75
    %v101 = vunpack.c.l.b16 %v76
    %v102 = vpack.c.b16 %v99, %v98
    %v103 = vpack.c.b16 %v101, %v100
    %vm106 = vcmask 261120
    %v108 = vsel %vm106, %v93, 0
    %110 = vmatprep.subr.bf16.mxu0 0
    %111 = vmatpush1.bf16.msra.mxu0 0
    %112 = vmatprep.subr.bf16.mxu0 0
    %113 = vmatpush1.bf16.msra.mxu0 0
    %114 = vmatprep.subr.bf16.mxu0 0
    %115 = vmatpush1.bf16.msra.mxu0 0
    %116 = vmatprep.subr.bf16.mxu0 0
    %117 = vmatpush1.bf16.msra.mxu0 0
    %118 = vmatprep.subr.bf16.mxu0 0
    %119 = vmatpush1.bf16.msra.mxu0 0
    %120 = vmatprep.subr.bf16.mxu0 0
    %121 = vmatpush1.bf16.msra.mxu0 0
    %122 = vmatprep.subr.bf16.mxu0 0
    %123 = vmatpush1.bf16.msra.mxu0 %v103
    %124 = vmatprep.subr.bf16.mxu0 0
    %125 = vmatpush1.bf16.msra.mxu0 %v102
    %126 = vmatprep.subr.bf16.mxu0 0
    %127 = vmatpush2.bf16.msra.mxu0 0
    %128 = vmatprep.subr.bf16.mxu0 0
    %129 = vmatpush2.bf16.msra.mxu0 0
    %130 = vmatprep.subr.bf16.mxu0 0
    %131 = vmatpush2.bf16.msra.mxu0 0
    %132 = vmatprep.subr.bf16.mxu0 0
    %133 = vmatpush2.bf16.msra.mxu0 0
    %134 = vmatprep.subr.bf16.mxu0 0
    %135 = vmatpush2.bf16.msra.mxu0 0
    %136 = vmatprep.subr.bf16.mxu0 0
    %137 = vmatpush2.bf16.msra.mxu0 0
    %138 = vmatprep.subr.bf16.mxu0 0
    %139 = vmatpush2.bf16.msra.mxu0 0
    %140 = vmatprep.subr.bf16.mxu0 0
    %141 = vmatpush2.bf16.msra.mxu0 0
    %142 = vmatprep.mubr.bf16.mxu0 0
    %143 = vmatmul.mubr.bf16.gmra.mxu0 %v108
    %v144 = vpop.f32.mrf.mxu0
    %v145 = vadd.f32 0.0, %v144
    %v146 = vpop.f32.mrf.mxu0
    %v147 = vpop.f32.mrf.mxu0
    %v148 = vadd.f32 0.0, %v147
    %v149 = vpop.f32.mrf.mxu0
    %150 = vdwg.mxu0
    %v155 = vunpack.c.l.b16 %v77
    %v156 = vunpack.c.l.b16 %v78
    %v157 = vunpack.c.l.b16 %v79
    %v158 = vunpack.c.l.b16 %v80
    %v159 = vpack.c.b16 %v156, %v155
    %v160 = vpack.c.b16 %v158, %v157
    %163 = vmatprep.subr.bf16.mxu0 0
    %164 = vmatpush1.bf16.msra.mxu0 0
    %165 = vmatprep.subr.bf16.mxu0 0
    %166 = vmatpush1.bf16.msra.mxu0 0
    %167 = vmatprep.subr.bf16.mxu0 0
    %168 = vmatpush1.bf16.msra.mxu0 0
    %169 = vmatprep.subr.bf16.mxu0 0
    %170 = vmatpush1.bf16.msra.mxu0 0
    %171 = vmatprep.subr.bf16.mxu0 0
    %172 = vmatpush1.bf16.msra.mxu0 0
    %173 = vmatprep.subr.bf16.mxu0 0
    %174 = vmatpush1.bf16.msra.mxu0 0
    %175 = vmatprep.subr.bf16.mxu0 0
    %176 = vmatpush1.bf16.msra.mxu0 %v160
    %177 = vmatprep.subr.bf16.mxu0 0
    %178 = vmatpush1.bf16.msra.mxu0 %v159
    %179 = vmatprep.subr.bf16.mxu0 0
    %180 = vmatpush2.bf16.msra.mxu0 0
    %181 = vmatprep.subr.bf16.mxu0 0
    %182 = vmatpush2.bf16.msra.mxu0 0
    %183 = vmatprep.subr.bf16.mxu0 0
    %184 = vmatpush2.bf16.msra.mxu0 0
    %185 = vmatprep.subr.bf16.mxu0 0
    %186 = vmatpush2.bf16.msra.mxu0 0
    %187 = vmatprep.subr.bf16.mxu0 0
    %188 = vmatpush2.bf16.msra.mxu0 0
    %189 = vmatprep.subr.bf16.mxu0 0
    %190 = vmatpush2.bf16.msra.mxu0 0
    %191 = vmatprep.subr.bf16.mxu0 0
    %192 = vmatpush2.bf16.msra.mxu0 0
    %193 = vmatprep.subr.bf16.mxu0 0
    %194 = vmatpush2.bf16.msra.mxu0 0
    %195 = vmatprep.mubr.bf16.mxu0 0
    %196 = vmatmul.mubr.bf16.gmra.mxu0 %v108
    %v197 = vpop.f32.mrf.mxu0
    %v198 = vadd.f32 0.0, %v197
    %v199 = vpop.f32.mrf.mxu0
    %v200 = vpop.f32.mrf.mxu0
    %v201 = vadd.f32 0.0, %v200
    %v202 = vpop.f32.mrf.mxu0
    %203 = vdwg.mxu0
    %v208 = vunpack.c.l.b16 %v81
    %v209 = vunpack.c.l.b16 %v82
    %v210 = vunpack.c.l.b16 %v83
    %v211 = vunpack.c.l.b16 %v84
    %v212 = vpack.c.b16 %v209, %v208
    %v213 = vpack.c.b16 %v211, %v210
    %216 = vmatprep.subr.bf16.mxu0 0
    %217 = vmatpush1.bf16.msra.mxu0 0
    %218 = vmatprep.subr.bf16.mxu0 0
    %219 = vmatpush1.bf16.msra.mxu0 0
    %220 = vmatprep.subr.bf16.mxu0 0
    %221 = vmatpush1.bf16.msra.mxu0 0
    %222 = vmatprep.subr.bf16.mxu0 0
    %223 = vmatpush1.bf16.msra.mxu0 0
    %224 = vmatprep.subr.bf16.mxu0 0
    %225 = vmatpush1.bf16.msra.mxu0 0
    %226 = vmatprep.subr.bf16.mxu0 0
    %227 = vmatpush1.bf16.msra.mxu0 0
    %228 = vmatprep.subr.bf16.mxu0 0
    %229 = vmatpush1.bf16.msra.mxu0 %v213
    %230 = vmatprep.subr.bf16.mxu0 0
    %231 = vmatpush1.bf16.msra.mxu0 %v212
    %232 = vmatprep.subr.bf16.mxu0 0
    %233 = vmatpush2.bf16.msra.mxu0 0
    %234 = vmatprep.subr.bf16.mxu0 0
    %235 = vmatpush2.bf16.msra.mxu0 0
    %236 = vmatprep.subr.bf16.mxu0 0
    %237 = vmatpush2.bf16.msra.mxu0 0
    %238 = vmatprep.subr.bf16.mxu0 0
    %239 = vmatpush2.bf16.msra.mxu0 0
    %240 = vmatprep.subr.bf16.mxu0 0
    %241 = vmatpush2.bf16.msra.mxu0 0
    %242 = vmatprep.subr.bf16.mxu0 0
    %243 = vmatpush2.bf16.msra.mxu0 0
    %244 = vmatprep.subr.bf16.mxu0 0
    %245 = vmatpush2.bf16.msra.mxu0 0
    %246 = vmatprep.subr.bf16.mxu0 0
    %247 = vmatpush2.bf16.msra.mxu0 0
    %248 = vmatprep.mubr.bf16.mxu0 0
    %249 = vmatmul.mubr.bf16.gmra.mxu0 %v108
    %v250 = vpop.f32.mrf.mxu0
    %v251 = vadd.f32 0.0, %v250
    %v252 = vpop.f32.mrf.mxu0
    %v253 = vpop.f32.mrf.mxu0
    %v254 = vadd.f32 0.0, %v253
    %v255 = vpop.f32.mrf.mxu0
    %256 = vdwg.mxu0
    %v257 = vpack.c.bf16 %v145, %v145
    %v258 = vpack.c.bf16 %v198, %v198
    %v259 = vpack.c.bf16 %v251, %v251
    %vm260 = vcmask 130048
    %v262 = vsel %vm260, %v257, 0
    %v265 = vsel %vm260, %v258, 0
    %267 = vmatprep.subr.bf16.mxu0 0
    %268 = vmatpush1.bf16.xpose.msra.mxu0 0
    %269 = vmatprep.subr.bf16.mxu0 0
    %270 = vmatpush1.bf16.xpose.msra.mxu0 0
    %271 = vmatprep.subr.bf16.mxu0 0
    %272 = vmatpush1.bf16.xpose.msra.mxu0 0
    %273 = vmatprep.subr.bf16.mxu0 0
    %274 = vmatpush1.bf16.xpose.msra.mxu0 0
    %275 = vmatprep.subr.bf16.mxu0 0
    %276 = vmatpush1.bf16.xpose.msra.mxu0 0
    %277 = vmatprep.subr.bf16.mxu0 0
    %278 = vmatpush1.bf16.xpose.msra.mxu0 0
    %279 = vmatprep.subr.bf16.mxu0 0
    %280 = vmatpush1.bf16.xpose.msra.mxu0 0
    %281 = vmatprep.subr.bf16.mxu0 0
    %282 = vmatpush1.bf16.xpose.msra.mxu0 %v265
    %283 = vmatprep.subr.bf16.mxu0 0
    %284 = vmatpush2.bf16.xpose.msra.mxu0 0
    %285 = vmatprep.subr.bf16.mxu0 0
    %286 = vmatpush2.bf16.xpose.msra.mxu0 0
    %287 = vmatprep.subr.bf16.mxu0 0
    %288 = vmatpush2.bf16.xpose.msra.mxu0 0
    %289 = vmatprep.subr.bf16.mxu0 0
    %290 = vmatpush2.bf16.xpose.msra.mxu0 0
    %291 = vmatprep.subr.bf16.mxu0 0
    %292 = vmatpush2.bf16.xpose.msra.mxu0 0
    %293 = vmatprep.subr.bf16.mxu0 0
    %294 = vmatpush2.bf16.xpose.msra.mxu0 0
    %295 = vmatprep.subr.bf16.mxu0 0
    %296 = vmatpush2.bf16.xpose.msra.mxu0 0
    %297 = vmatprep.subr.bf16.mxu0 0
    %298 = vmatpush2.bf16.xpose.msra.mxu0 0
    %299 = vmatprep.mubr.bf16.mxu0 0
    %300 = vmatmul.mubr.bf16.gmra.mxu0 %v262
    %v301 = vpop.f32.mrf.mxu0
    %v302 = vadd.f32 0.0, %v301
    %v303 = vpop.f32.mrf.mxu0
    %v304 = vpop.f32.mrf.mxu0
    %v305 = vpop.f32.mrf.mxu0
    %306 = vdwg.mxu0
    %v307 = vmul.f32 %v302, 0.25
    %vm308 = vcmask 64512
    %v309 = vsel %vm308, %v307, -inf
    %310 = vmax.xlane.f32.xlu0 %v309
    %v311 = vpop.xlane.xlu0 %310
    %v312 = vsub.f32 %v307, %v311
    %v313 = vmul.f32 %v312, 1.442695
    %v314 = vpow.pop %v313
    %v315 = vsel %vm308, %v314, 0.0
    %316 = vadd.xlane.f32.xlu0 %v315
    %v317 = vpop.xlane.xlu0 %316
    %v318 = vrcp.pop %v317
    %v319 = vmul.f32 %v314, %v318
    %v320 = vpack.c.bf16 %v319, %v319
    %v322 = vsel %vm308, %v320, 0
    %vm324 = vcmask 1043456
    %v326 = vsel %vm324, %v259, 0
    %328 = vmatprep.subr.bf16.mxu0 0
    %329 = vmatpush1.bf16.msra.mxu0 0
    %330 = vmatprep.subr.bf16.mxu0 0
    %331 = vmatpush1.bf16.msra.mxu0 0
    %332 = vmatprep.subr.bf16.mxu0 0
    %333 = vmatpush1.bf16.msra.mxu0 0
    %334 = vmatprep.subr.bf16.mxu0 0
    %335 = vmatpush1.bf16.msra.mxu0 0
    %336 = vmatprep.subr.bf16.mxu0 0
    %337 = vmatpush1.bf16.msra.mxu0 0
    %338 = vmatprep.subr.bf16.mxu0 0
    %339 = vmatpush1.bf16.msra.mxu0 0
    %340 = vmatprep.subr.bf16.mxu0 0
    %341 = vmatpush1.bf16.msra.mxu0 0
    %342 = vmatprep.subr.bf16.mxu0 0
    %343 = vmatpush1.bf16.msra.mxu0 %v326
    %344 = vmatprep.subr.bf16.mxu0 0
    %345 = vmatpush2.bf16.msra.mxu0 0
    %346 = vmatprep.subr.bf16.mxu0 0
    %347 = vmatpush2.bf16.msra.mxu0 0
    %348 = vmatprep.subr.bf16.mxu0 0
    %349 = vmatpush2.bf16.msra.mxu0 0
    %350 = vmatprep.subr.bf16.mxu0 0
    %351 = vmatpush2.bf16.msra.mxu0 0
    %352 = vmatprep.subr.bf16.mxu0 0
    %353 = vmatpush2.bf16.msra.mxu0 0
    %354 = vmatprep.subr.bf16.mxu0 0
    %355 = vmatpush2.bf16.msra.mxu0 0
    %356 = vmatprep.subr.bf16.mxu0 0
    %357 = vmatpush2.bf16.msra.mxu0 0
    %358 = vmatprep.subr.bf16.mxu0 0
    %359 = vmatpush2.bf16.msra.mxu0 0
    %360 = vmatprep.mubr.bf16.mxu0 0
    %361 = vmatmul.mubr.bf16.gmra.mxu0 %v322
    %v362 = vpop.f32.mrf.mxu0
    %v363 = vadd.f32 0.0, %v362
    %v364 = vpop.f32.mrf.mxu0
    %v365 = vpop.f32.mrf.mxu0
    %v366 = vpop.f32.mrf.mxu0
    %367 = vdwg.mxu0
    %369 = vrot.lane.b32.xlu0 %v257, 112
    %v370 = vpop.permute.xlu0 %369
    %372 = vrot.lane.b32.xlu0 %v258, 112
    %v373 = vpop.permute.xlu0 %372
    %v375 = vsel %vm260, %v370, 0
    %v378 = vsel %vm260, %v373, 0
    %380 = vmatprep.subr.bf16.mxu0 0
    %381 = vmatpush1.bf16.xpose.msra.mxu0 0
    %382 = vmatprep.subr.bf16.mxu0 0
    %383 = vmatpush1.bf16.xpose.msra.mxu0 0
    %384 = vmatprep.subr.bf16.mxu0 0
    %385 = vmatpush1.bf16.xpose.msra.mxu0 0
    %386 = vmatprep.subr.bf16.mxu0 0
    %387 = vmatpush1.bf16.xpose.msra.mxu0 0
    %388 = vmatprep.subr.bf16.mxu0 0
    %389 = vmatpush1.bf16.xpose.msra.mxu0 0
    %390 = vmatprep.subr.bf16.mxu0 0
    %391 = vmatpush1.bf16.xpose.msra.mxu0 0
    %392 = vmatprep.subr.bf16.mxu0 0
    %393 = vmatpush1.bf16.xpose.msra.mxu0 0
    %394 = vmatprep.subr.bf16.mxu0 0
    %395 = vmatpush1.bf16.xpose.msra.mxu0 %v378
    %396 = vmatprep.subr.bf16.mxu0 0
    %397 = vmatpush2.bf16.xpose.msra.mxu0 0
    %398 = vmatprep.subr.bf16.mxu0 0
    %399 = vmatpush2.bf16.xpose.msra.mxu0 0
    %400 = vmatprep.subr.bf16.mxu0 0
    %401 = vmatpush2.bf16.xpose.msra.mxu0 0
    %402 = vmatprep.subr.bf16.mxu0 0
    %403 = vmatpush2.bf16.xpose.msra.mxu0 0
    %404 = vmatprep.subr.bf16.mxu0 0
    %405 = vmatpush2.bf16.xpose.msra.mxu0 0
    %406 = vmatprep.subr.bf16.mxu0 0
    %407 = vmatpush2.bf16.xpose.msra.mxu0 0
    %408 = vmatprep.subr.bf16.mxu0 0
    %409 = vmatpush2.bf16.xpose.msra.mxu0 0
    %410 = vmatprep.subr.bf16.mxu0 0
    %411 = vmatpush2.bf16.xpose.msra.mxu0 0
    %412 = vmatprep.mubr.bf16.mxu0 0
    %413 = vmatmul.mubr.bf16.gmra.mxu0 %v375
    %v414 = vpop.f32.mrf.mxu0
    %v415 = vadd.f32 0.0, %v414
    %v416 = vpop.f32.mrf.mxu0
    %v417 = vpop.f32.mrf.mxu0
    %v418 = vpop.f32.mrf.mxu0
    %419 = vdwg.mxu0
    %v420 = vmul.f32 %v415, 0.25
    %v421 = vsel %vm308, %v420, -inf
    %422 = vmax.xlane.f32.xlu0 %v421
    %v423 = vpop.xlane.xlu0 %422
    %v424 = vsub.f32 %v420, %v423
    %v425 = vmul.f32 %v424, 1.442695
    %v426 = vpow.pop %v425
    %v427 = vsel %vm308, %v426, 0.0
    %428 = vadd.xlane.f32.xlu0 %v427
    %v429 = vpop.xlane.xlu0 %428
    %v430 = vrcp.pop %v429
    %v431 = vmul.f32 %v426, %v430
    %v432 = vpack.c.bf16 %v431, %v431
    %434 = vrot.lane.b32.xlu0 %v259, 96
    %v435 = vpop.permute.xlu0 %434
    %v437 = vsel %vm308, %v432, 0
    %v440 = vsel %vm324, %v435, 0
    %442 = vmatprep.subr.bf16.mxu0 0
    %443 = vmatpush1.bf16.msra.mxu0 0
    %444 = vmatprep.subr.bf16.mxu0 0
    %445 = vmatpush1.bf16.msra.mxu0 0
    %446 = vmatprep.subr.bf16.mxu0 0
    %447 = vmatpush1.bf16.msra.mxu0 0
    %448 = vmatprep.subr.bf16.mxu0 0
    %449 = vmatpush1.bf16.msra.mxu0 0
    %450 = vmatprep.subr.bf16.mxu0 0
    %451 = vmatpush1.bf16.msra.mxu0 0
    %452 = vmatprep.subr.bf16.mxu0 0
    %453 = vmatpush1.bf16.msra.mxu0 0
    %454 = vmatprep.subr.bf16.mxu0 0
    %455 = vmatpush1.bf16.msra.mxu0 0
    %456 = vmatprep.subr.bf16.mxu0 0
    %457 = vmatpush1.bf16.msra.mxu0 %v440
    %458 = vmatprep.subr.bf16.mxu0 0
    %459 = vmatpush2.bf16.msra.mxu0 0
    %460 = vmatprep.subr.bf16.mxu0 0
    %461 = vmatpush2.bf16.msra.mxu0 0
    %462 = vmatprep.subr.bf16.mxu0 0
    %463 = vmatpush2.bf16.msra.mxu0 0
    %464 = vmatprep.subr.bf16.mxu0 0
    %465 = vmatpush2.bf16.msra.mxu0 0
    %466 = vmatprep.subr.bf16.mxu0 0
    %467 = vmatpush2.bf16.msra.mxu0 0
    %468 = vmatprep.subr.bf16.mxu0 0
    %469 = vmatpush2.bf16.msra.mxu0 0
    %470 = vmatprep.subr.bf16.mxu0 0
    %471 = vmatpush2.bf16.msra.mxu0 0
    %472 = vmatprep.subr.bf16.mxu0 0
    %473 = vmatpush2.bf16.msra.mxu0 0
    %474 = vmatprep.mubr.bf16.mxu0 0
    %475 = vmatmul.mubr.bf16.gmra.mxu0 %v437
    %v476 = vpop.f32.mrf.mxu0
    %v477 = vadd.f32 0.0, %v476
    %v478 = vpop.f32.mrf.mxu0
    %v479 = vpop.f32.mrf.mxu0
    %v480 = vpop.f32.mrf.mxu0
    %481 = vdwg.mxu0
    %483 = vrot.lane.b32.xlu0 %v477, 32
    %v484 = vpop.permute.xlu0 %483
    %v486 = vsel %vm106, %v363, %v484
    %v487 = vpack.c.bf16 %v148, %v148
    %v488 = vpack.c.bf16 %v201, %v201
    %v489 = vpack.c.bf16 %v254, %v254
    %v491 = vsel %vm260, %v487, 0
    %v494 = vsel %vm260, %v488, 0
    %496 = vmatprep.subr.bf16.mxu0 0
    %497 = vmatpush1.bf16.xpose.msra.mxu0 0
    %498 = vmatprep.subr.bf16.mxu0 0
    %499 = vmatpush1.bf16.xpose.msra.mxu0 0
    %500 = vmatprep.subr.bf16.mxu0 0
    %501 = vmatpush1.bf16.xpose.msra.mxu0 0
    %502 = vmatprep.subr.bf16.mxu0 0
    %503 = vmatpush1.bf16.xpose.msra.mxu0 0
    %504 = vmatprep.subr.bf16.mxu0 0
    %505 = vmatpush1.bf16.xpose.msra.mxu0 0
    %506 = vmatprep.subr.bf16.mxu0 0
    %507 = vmatpush1.bf16.xpose.msra.mxu0 0
    %508 = vmatprep.subr.bf16.mxu0 0
    %509 = vmatpush1.bf16.xpose.msra.mxu0 0
    %510 = vmatprep.subr.bf16.mxu0 0
    %511 = vmatpush1.bf16.xpose.msra.mxu0 %v494
    %512 = vmatprep.subr.bf16.mxu0 0
    %513 = vmatpush2.bf16.xpose.msra.mxu0 0
    %514 = vmatprep.subr.bf16.mxu0 0
    %515 = vmatpush2.bf16.xpose.msra.mxu0 0
    %516 = vmatprep.subr.bf16.mxu0 0
    %517 = vmatpush2.bf16.xpose.msra.mxu0 0
    %518 = vmatprep.subr.bf16.mxu0 0
    %519 = vmatpush2.bf16.xpose.msra.mxu0 0
    %520 = vmatprep.subr.bf16.mxu0 0
    %521 = vmatpush2.bf16.xpose.msra.mxu0 0
    %522 = vmatprep.subr.bf16.mxu0 0
    %523 = vmatpush2.bf16.xpose.msra.mxu0 0
    %524 = vmatprep.subr.bf16.mxu0 0
    %525 = vmatpush2.bf16.xpose.msra.mxu0 0
    %526 = vmatprep.subr.bf16.mxu0 0
    %527 = vmatpush2.bf16.xpose.msra.mxu0 0
    %528 = vmatprep.mubr.bf16.mxu0 0
    %529 = vmatmul.mubr.bf16.gmra.mxu0 %v491
    %v530 = vpop.f32.mrf.mxu0
    %v531 = vadd.f32 0.0, %v530
    %v532 = vpop.f32.mrf.mxu0
    %v533 = vpop.f32.mrf.mxu0
    %v534 = vpop.f32.mrf.mxu0
    %535 = vdwg.mxu0
    %v536 = vmul.f32 %v531, 0.25
    %v537 = vsel %vm308, %v536, -inf
    %538 = vmax.xlane.f32.xlu0 %v537
    %v539 = vpop.xlane.xlu0 %538
    %v540 = vsub.f32 %v536, %v539
    %v541 = vmul.f32 %v540, 1.442695
    %v542 = vpow.pop %v541
    %v543 = vsel %vm308, %v542, 0.0
    %544 = vadd.xlane.f32.xlu0 %v543
    %v545 = vpop.xlane.xlu0 %544
    %v546 = vrcp.pop %v545
    %v547 = vmul.f32 %v542, %v546
    %v548 = vpack.c.bf16 %v547, %v547
    %v550 = vsel %vm308, %v548, 0
    %v553 = vsel %vm324, %v489, 0
    %555 = vmatprep.subr.bf16.mxu0 0
    %556 = vmatpush1.bf16.msra.mxu0 0
    %557 = vmatprep.subr.bf16.mxu0 0
    %558 = vmatpush1.bf16.msra.mxu0 0
    %559 = vmatprep.subr.bf16.mxu0 0
    %560 = vmatpush1.bf16.msra.mxu0 0
    %561 = vmatprep.subr.bf16.mxu0 0
    %562 = vmatpush1.bf16.msra.mxu0 0
    %563 = vmatprep.subr.bf16.mxu0 0
    %564 = vmatpush1.bf16.msra.mxu0 0
    %565 = vmatprep.subr.bf16.mxu0 0
    %566 = vmatpush1.bf16.msra.mxu0 0
    %567 = vmatprep.subr.bf16.mxu0 0
    %568 = vmatpush1.bf16.msra.mxu0 0
    %569 = vmatprep.subr.bf16.mxu0 0
    %570 = vmatpush1.bf16.msra.mxu0 %v553
    %571 = vmatprep.subr.bf16.mxu0 0
    %572 = vmatpush2.bf16.msra.mxu0 0
    %573 = vmatprep.subr.bf16.mxu0 0
    %574 = vmatpush2.bf16.msra.mxu0 0
    %575 = vmatprep.subr.bf16.mxu0 0
    %576 = vmatpush2.bf16.msra.mxu0 0
    %577 = vmatprep.subr.bf16.mxu0 0
    %578 = vmatpush2.bf16.msra.mxu0 0
    %579 = vmatprep.subr.bf16.mxu0 0
    %580 = vmatpush2.bf16.msra.mxu0 0
    %581 = vmatprep.subr.bf16.mxu0 0
    %582 = vmatpush2.bf16.msra.mxu0 0
    %583 = vmatprep.subr.bf16.mxu0 0
    %584 = vmatpush2.bf16.msra.mxu0 0
    %585 = vmatprep.subr.bf16.mxu0 0
    %586 = vmatpush2.bf16.msra.mxu0 0
    %587 = vmatprep.mubr.bf16.mxu0 0
    %588 = vmatmul.mubr.bf16.gmra.mxu0 %v550
    %v589 = vpop.f32.mrf.mxu0
    %v590 = vadd.f32 0.0, %v589
    %v591 = vpop.f32.mrf.mxu0
    %v592 = vpop.f32.mrf.mxu0
    %v593 = vpop.f32.mrf.mxu0
    %594 = vdwg.mxu0
    %596 = vrot.lane.b32.xlu0 %v487, 112
    %v597 = vpop.permute.xlu0 %596
    %599 = vrot.lane.b32.xlu0 %v488, 112
    %v600 = vpop.permute.xlu0 %599
    %v602 = vsel %vm260, %v597, 0
    %v605 = vsel %vm260, %v600, 0
    %607 = vmatprep.subr.bf16.mxu0 0
    %608 = vmatpush1.bf16.xpose.msra.mxu0 0
    %609 = vmatprep.subr.bf16.mxu0 0
    %610 = vmatpush1.bf16.xpose.msra.mxu0 0
    %611 = vmatprep.subr.bf16.mxu0 0
    %612 = vmatpush1.bf16.xpose.msra.mxu0 0
    %613 = vmatprep.subr.bf16.mxu0 0
    %614 = vmatpush1.bf16.xpose.msra.mxu0 0
    %615 = vmatprep.subr.bf16.mxu0 0
    %616 = vmatpush1.bf16.xpose.msra.mxu0 0
    %617 = vmatprep.subr.bf16.mxu0 0
    %618 = vmatpush1.bf16.xpose.msra.mxu0 0
    %619 = vmatprep.subr.bf16.mxu0 0
    %620 = vmatpush1.bf16.xpose.msra.mxu0 0
    %621 = vmatprep.subr.bf16.mxu0 0
    %622 = vmatpush1.bf16.xpose.msra.mxu0 %v605
    %623 = vmatprep.subr.bf16.mxu0 0
    %624 = vmatpush2.bf16.xpose.msra.mxu0 0
    %625 = vmatprep.subr.bf16.mxu0 0
    %626 = vmatpush2.bf16.xpose.msra.mxu0 0
    %627 = vmatprep.subr.bf16.mxu0 0
    %628 = vmatpush2.bf16.xpose.msra.mxu0 0
    %629 = vmatprep.subr.bf16.mxu0 0
    %630 = vmatpush2.bf16.xpose.msra.mxu0 0
    %631 = vmatprep.subr.bf16.mxu0 0
    %632 = vmatpush2.bf16.xpose.msra.mxu0 0
    %633 = vmatprep.subr.bf16.mxu0 0
    %634 = vmatpush2.bf16.xpose.msra.mxu0 0
    %635 = vmatprep.subr.bf16.mxu0 0
    %636 = vmatpush2.bf16.xpose.msra.mxu0 0
    %637 = vmatprep.subr.bf16.mxu0 0
    %638 = vmatpush2.bf16.xpose.msra.mxu0 0
    %639 = vmatprep.mubr.bf16.mxu0 0
    %640 = vmatmul.mubr.bf16.gmra.mxu0 %v602
    %v641 = vpop.f32.mrf.mxu0
    %v642 = vadd.f32 0.0, %v641
    %v643 = vpop.f32.mrf.mxu0
    %v644 = vpop.f32.mrf.mxu0
    %v645 = vpop.f32.mrf.mxu0
    %646 = vdwg.mxu0
    %v647 = vmul.f32 %v642, 0.25
    %v648 = vsel %vm308, %v647, -inf
    %649 = vmax.xlane.f32.xlu0 %v648
    %v650 = vpop.xlane.xlu0 %649
    %v651 = vsub.f32 %v647, %v650
    %v652 = vmul.f32 %v651, 1.442695
    %v653 = vpow.pop %v652
    %v654 = vsel %vm308, %v653, 0.0
    %655 = vadd.xlane.f32.xlu0 %v654
    %v656 = vpop.xlane.xlu0 %655
    %v657 = vrcp.pop %v656
    %v658 = vmul.f32 %v653, %v657
    %v659 = vpack.c.bf16 %v658, %v658
    %661 = vrot.lane.b32.xlu0 %v489, 96
    %v662 = vpop.permute.xlu0 %661
    %v664 = vsel %vm308, %v659, 0
    %v667 = vsel %vm324, %v662, 0
    %669 = vmatprep.subr.bf16.mxu0 0
    %670 = vmatpush1.bf16.msra.mxu0 0
    %671 = vmatprep.subr.bf16.mxu0 0
    %672 = vmatpush1.bf16.msra.mxu0 0
    %673 = vmatprep.subr.bf16.mxu0 0
    %674 = vmatpush1.bf16.msra.mxu0 0
    %675 = vmatprep.subr.bf16.mxu0 0
    %676 = vmatpush1.bf16.msra.mxu0 0
    %677 = vmatprep.subr.bf16.mxu0 0
    %678 = vmatpush1.bf16.msra.mxu0 0
    %679 = vmatprep.subr.bf16.mxu0 0
    %680 = vmatpush1.bf16.msra.mxu0 0
    %681 = vmatprep.subr.bf16.mxu0 0
    %682 = vmatpush1.bf16.msra.mxu0 0
    %683 = vmatprep.subr.bf16.mxu0 0
    %684 = vmatpush1.bf16.msra.mxu0 %v667
    %685 = vmatprep.subr.bf16.mxu0 0
    %686 = vmatpush2.bf16.msra.mxu0 0
    %687 = vmatprep.subr.bf16.mxu0 0
    %688 = vmatpush2.bf16.msra.mxu0 0
    %689 = vmatprep.subr.bf16.mxu0 0
    %690 = vmatpush2.bf16.msra.mxu0 0
    %691 = vmatprep.subr.bf16.mxu0 0
    %692 = vmatpush2.bf16.msra.mxu0 0
    %693 = vmatprep.subr.bf16.mxu0 0
    %694 = vmatpush2.bf16.msra.mxu0 0
    %695 = vmatprep.subr.bf16.mxu0 0
    %696 = vmatpush2.bf16.msra.mxu0 0
    %697 = vmatprep.subr.bf16.mxu0 0
    %698 = vmatpush2.bf16.msra.mxu0 0
    %699 = vmatprep.subr.bf16.mxu0 0
    %700 = vmatpush2.bf16.msra.mxu0 0
    %701 = vmatprep.mubr.bf16.mxu0 0
    %702 = vmatmul.mubr.bf16.gmra.mxu0 %v664
    %v703 = vpop.f32.mrf.mxu0
    %v704 = vadd.f32 0.0, %v703
    %v705 = vpop.f32.mrf.mxu0
    %v706 = vpop.f32.mrf.mxu0
    %v707 = vpop.f32.mrf.mxu0
    %708 = vdwg.mxu0
    %710 = vrot.lane.b32.xlu0 %v704, 32
    %v711 = vpop.permute.xlu0 %710
    %v713 = vsel %vm106, %v590, %v711
    %v714 = vpack.c.bf16 %v713, %v486
    %v723 = vunpack.c.l.b16 %v85
    %v724 = vunpack.c.l.b16 %v86
    %v725 = vunpack.c.l.b16 %v87
    %v726 = vunpack.c.l.b16 %v88
    %v727 = vunpack.c.l.b16 %v89
    %v728 = vunpack.c.l.b16 %v90
    %v729 = vunpack.c.l.b16 %v91
    %v730 = vunpack.c.l.b16 %v92
    %v731 = vpack.c.b16 %v724, %v723
    %v732 = vpack.c.b16 %v726, %v725
    %v733 = vpack.c.b16 %v728, %v727
    %v734 = vpack.c.b16 %v730, %v729
    %vm739 = vcmask 523264
    %v741 = vsel %vm739, %v714, 0
    %743 = vmatprep.subr.bf16.mxu0 0
    %744 = vmatpush1.bf16.msra.mxu0 0
    %745 = vmatprep.subr.bf16.mxu0 0
    %746 = vmatpush1.bf16.msra.mxu0 0
    %747 = vmatprep.subr.bf16.mxu0 0
    %748 = vmatpush1.bf16.msra.mxu0 0
    %749 = vmatprep.subr.bf16.mxu0 0
    %750 = vmatpush1.bf16.msra.mxu0 0
    %751 = vmatprep.subr.bf16.mxu0 0
    %752 = vmatpush1.bf16.msra.mxu0 %v734
    %753 = vmatprep.subr.bf16.mxu0 0
    %754 = vmatpush1.bf16.msra.mxu0 %v733
    %755 = vmatprep.subr.bf16.mxu0 0
    %756 = vmatpush1.bf16.msra.mxu0 %v732
    %757 = vmatprep.subr.bf16.mxu0 0
    %758 = vmatpush1.bf16.msra.mxu0 %v731
    %759 = vmatprep.subr.bf16.mxu0 0
    %760 = vmatpush2.bf16.msra.mxu0 0
    %761 = vmatprep.subr.bf16.mxu0 0
    %762 = vmatpush2.bf16.msra.mxu0 0
    %763 = vmatprep.subr.bf16.mxu0 0
    %764 = vmatpush2.bf16.msra.mxu0 0
    %765 = vmatprep.subr.bf16.mxu0 0
    %766 = vmatpush2.bf16.msra.mxu0 0
    %767 = vmatprep.subr.bf16.mxu0 0
    %768 = vmatpush2.bf16.msra.mxu0 0
    %769 = vmatprep.subr.bf16.mxu0 0
    %770 = vmatpush2.bf16.msra.mxu0 0
    %771 = vmatprep.subr.bf16.mxu0 0
    %772 = vmatpush2.bf16.msra.mxu0 0
    %773 = vmatprep.subr.bf16.mxu0 0
    %774 = vmatpush2.bf16.msra.mxu0 0
    %775 = vmatprep.mubr.bf16.mxu0 0
    %776 = vmatmul.mubr.bf16.gmra.mxu0 %v741
    %v777 = vpop.f32.mrf.mxu0
    %v778 = vadd.f32 %v60, %v777
    %v779 = vpop.f32.mrf.mxu0
    %v780 = vpop.f32.mrf.mxu0
    %v781 = vadd.f32 %v61, %v780
    %v782 = vpop.f32.mrf.mxu0
    %783 = vdwg.mxu0
    %v784 = vsel %vm106, %v778, 0.0
    %785 = vadd.xlane.f32.xlu0 %v784
    %v786 = vpop.xlane.xlu0 %785
    %v787 = vsel %vm106, %v781, 0.0
    %788 = vadd.xlane.f32.xlu0 %v787
    %v789 = vpop.xlane.xlu0 %788
    %v790 = vrcp.pop 32.0
    %v791 = vmul.f32 %v786, %v790
    %v792 = vmul.f32 %v789, %v790
    %v793 = vsub.f32 %v778, %v791
    %v794 = vsub.f32 %v781, %v792
    %v795 = vmul.f32 %v793, %v793
    %v796 = vmul.f32 %v794, %v794
    %v797 = vsel %vm106, %v795, 0.0
    %798 = vadd.xlane.f32.xlu0 %v797
    %v799 = vpop.xlane.xlu0 %798
    %v800 = vsel %vm106, %v796, 0.0
    %801 = vadd.xlane.f32.xlu0 %v800
    %v802 = vpop.xlane.xlu0 %801
    %v803 = vmul.f32 %v799, %v790
    %v804 = vmul.f32 %v802, %v790
    %v805 = vadd.f32 %v803, 1e-05
    %v806 = vadd.f32 %v804, 1e-05
    %v807 = vrsqrt.pop %v805
    %v808 = vrsqrt.pop %v806
    %v809 = vmul.f32 %v793, %v807
    %v810 = vmul.f32 %v794, %v808
    %v811 = vlaneseq
    %v812 = vshrl.u32 %v811, 7
    %v813 = vsub.s32 2, %v812
    %v814 = vrot.slane %v72, %v813
    %v815 = vmul.f32 %v809, %v814
    %v816 = vmul.f32 %v810, %v814
    %v817 = vlaneseq
    %v818 = vshrl.u32 %v817, 7
    %v819 = vsub.s32 3, %v818
    %v820 = vrot.slane %v72, %v819
    %v821 = vadd.f32 %v815, %v820
    %v822 = vadd.f32 %v816, %v820
    %v823 = vld [vmem:[%s6] sm:$0xf]
    %v824 = vld [vmem:[%s6 + $0x4] sm:$0xf]
    %v825 = vld [vmem:[%s6 + $0x8] sm:$0xf]
    %v826 = vld [vmem:[%s6 + $0xc] sm:$0xf]
    %v827 = vld [vmem:[%s7] sm:$0xf]
    %v828 = vld [vmem:[%s7 + $0x4] sm:$0xf]
    %v829 = vld [vmem:[%s7 + $0x8] sm:$0xf]
    %v830 = vld [vmem:[%s7 + $0xc] sm:$0xf]
    %v831 = vld [vmem:[%s8] sm:$0xf]
    %v832 = vld [vmem:[%s8 + $0x4] sm:$0xf]
    %v833 = vld [vmem:[%s8 + $0x8] sm:$0xf]
    %v834 = vld [vmem:[%s8 + $0xc] sm:$0xf]
    %v835 = vld [vmem:[%s9] sm:$0xf]
    %v836 = vld [vmem:[%s9 + $0x4] sm:$0xf]
    %v837 = vld [vmem:[%s9 + $0x8] sm:$0xf]
    %v838 = vld [vmem:[%s9 + $0xc] sm:$0xf]
    %v839 = vld [vmem:[%s9 + $0x10] sm:$0xf]
    %v840 = vld [vmem:[%s9 + $0x14] sm:$0xf]
    %v841 = vld [vmem:[%s9 + $0x18] sm:$0xf]
    %v842 = vld [vmem:[%s9 + $0x1c] sm:$0xf]
    %v843 = vpack.c.bf16 %v822, %v821
    %v844 = vcombine.low %v62, %v70
    %v845 = vcombine.low %v63, %v64
    %v846 = vcombine.low %v71, %v65
    %v850 = vpack.c.bf16 %v845, %v844
    %v851 = vpack.c.bf16 %v846, %v846
    %v856 = vunpack.c.l.b16 %v823
    %v857 = vunpack.c.l.b16 %v824
    %v858 = vunpack.c.l.b16 %v825
    %v859 = vunpack.c.l.b16 %v826
    %v860 = vpack.c.b16 %v857, %v856
    %v861 = vpack.c.b16 %v859, %v858
    %v865 = vsel %vm106, %v843, 0
    %867 = vmatprep.subr.bf16.mxu0 0
    %868 = vmatpush1.bf16.msra.mxu0 0
    %869 = vmatprep.subr.bf16.mxu0 0
    %870 = vmatpush1.bf16.msra.mxu0 0
    %871 = vmatprep.subr.bf16.mxu0 0
    %872 = vmatpush1.bf16.msra.mxu0 0
    %873 = vmatprep.subr.bf16.mxu0 0
    %874 = vmatpush1.bf16.msra.mxu0 0
    %875 = vmatprep.subr.bf16.mxu0 0
    %876 = vmatpush1.bf16.msra.mxu0 0
    %877 = vmatprep.subr.bf16.mxu0 0
    %878 = vmatpush1.bf16.msra.mxu0 0
    %879 = vmatprep.subr.bf16.mxu0 0
    %880 = vmatpush1.bf16.msra.mxu0 %v861
    %881 = vmatprep.subr.bf16.mxu0 0
    %882 = vmatpush1.bf16.msra.mxu0 %v860
    %883 = vmatprep.subr.bf16.mxu0 0
    %884 = vmatpush2.bf16.msra.mxu0 0
    %885 = vmatprep.subr.bf16.mxu0 0
    %886 = vmatpush2.bf16.msra.mxu0 0
    %887 = vmatprep.subr.bf16.mxu0 0
    %888 = vmatpush2.bf16.msra.mxu0 0
    %889 = vmatprep.subr.bf16.mxu0 0
    %890 = vmatpush2.bf16.msra.mxu0 0
    %891 = vmatprep.subr.bf16.mxu0 0
    %892 = vmatpush2.bf16.msra.mxu0 0
    %893 = vmatprep.subr.bf16.mxu0 0
    %894 = vmatpush2.bf16.msra.mxu0 0
    %895 = vmatprep.subr.bf16.mxu0 0
    %896 = vmatpush2.bf16.msra.mxu0 0
    %897 = vmatprep.subr.bf16.mxu0 0
    %898 = vmatpush2.bf16.msra.mxu0 0
    %899 = vmatprep.mubr.bf16.mxu0 0
    %900 = vmatmul.mubr.bf16.gmra.mxu0 %v865
    %v901 = vpop.f32.mrf.mxu0
    %v902 = vadd.f32 0.0, %v901
    %v903 = vpop.f32.mrf.mxu0
    %v904 = vpop.f32.mrf.mxu0
    %v905 = vadd.f32 0.0, %v904
    %v906 = vpop.f32.mrf.mxu0
    %907 = vdwg.mxu0
    %v912 = vunpack.c.l.b16 %v827
    %v913 = vunpack.c.l.b16 %v828
    %v914 = vunpack.c.l.b16 %v829
    %v915 = vunpack.c.l.b16 %v830
    %v916 = vpack.c.b16 %v913, %v912
    %v917 = vpack.c.b16 %v915, %v914
    %v921 = vsel %vm106, %v850, 0
    %v924 = vsel %vm106, %v851, 0
    %926 = vmatprep.subr.bf16.mxu0 0
    %927 = vmatpush1.bf16.msra.mxu0 0
    %928 = vmatprep.subr.bf16.mxu0 0
    %929 = vmatpush1.bf16.msra.mxu0 0
    %930 = vmatprep.subr.bf16.mxu0 0
    %931 = vmatpush1.bf16.msra.mxu0 0
    %932 = vmatprep.subr.bf16.mxu0 0
    %933 = vmatpush1.bf16.msra.mxu0 0
    %934 = vmatprep.subr.bf16.mxu0 0
    %935 = vmatpush1.bf16.msra.mxu0 0
    %936 = vmatprep.subr.bf16.mxu0 0
    %937 = vmatpush1.bf16.msra.mxu0 0
    %938 = vmatprep.subr.bf16.mxu0 0
    %939 = vmatpush1.bf16.msra.mxu0 %v917
    %940 = vmatprep.subr.bf16.mxu0 0
    %941 = vmatpush1.bf16.msra.mxu0 %v916
    %942 = vmatprep.subr.bf16.mxu0 0
    %943 = vmatpush2.bf16.msra.mxu0 0
    %944 = vmatprep.subr.bf16.mxu0 0
    %945 = vmatpush2.bf16.msra.mxu0 0
    %946 = vmatprep.subr.bf16.mxu0 0
    %947 = vmatpush2.bf16.msra.mxu0 0
    %948 = vmatprep.subr.bf16.mxu0 0
    %949 = vmatpush2.bf16.msra.mxu0 0
    %950 = vmatprep.subr.bf16.mxu0 0
    %951 = vmatpush2.bf16.msra.mxu0 0
    %952 = vmatprep.subr.bf16.mxu0 0
    %953 = vmatpush2.bf16.msra.mxu0 0
    %954 = vmatprep.subr.bf16.mxu0 0
    %955 = vmatpush2.bf16.msra.mxu0 0
    %956 = vmatprep.subr.bf16.mxu0 0
    %957 = vmatpush2.bf16.msra.mxu0 0
    %958 = vmatprep.mubr.bf16.mxu0 0
    %959 = vmatmul.mubr.bf16.gmra.mxu0 %v921
    %v960 = vpop.f32.mrf.mxu0
    %v961 = vadd.f32 0.0, %v960
    %v962 = vpop.f32.mrf.mxu0
    %v963 = vpop.f32.mrf.mxu0
    %v964 = vadd.f32 0.0, %v963
    %v965 = vpop.f32.mrf.mxu0
    %966 = vmatprep.mubr.bf16.mxu0 0
    %967 = vmatmul.mubr.bf16.gmra.mxu0 %v924
    %v968 = vpop.f32.mrf.mxu0
    %v969 = vadd.f32 0.0, %v968
    %v970 = vpop.f32.mrf.mxu0
    %v971 = vpop.f32.mrf.mxu0
    %v972 = vpop.f32.mrf.mxu0
    %973 = vdwg.mxu0
    %v978 = vunpack.c.l.b16 %v831
    %v979 = vunpack.c.l.b16 %v832
    %v980 = vunpack.c.l.b16 %v833
    %v981 = vunpack.c.l.b16 %v834
    %v982 = vpack.c.b16 %v979, %v978
    %v983 = vpack.c.b16 %v981, %v980
    %986 = vmatprep.subr.bf16.mxu0 0
    %987 = vmatpush1.bf16.msra.mxu0 0
    %988 = vmatprep.subr.bf16.mxu0 0
    %989 = vmatpush1.bf16.msra.mxu0 0
    %990 = vmatprep.subr.bf16.mxu0 0
    %991 = vmatpush1.bf16.msra.mxu0 0
    %992 = vmatprep.subr.bf16.mxu0 0
    %993 = vmatpush1.bf16.msra.mxu0 0
    %994 = vmatprep.subr.bf16.mxu0 0
    %995 = vmatpush1.bf16.msra.mxu0 0
    %996 = vmatprep.subr.bf16.mxu0 0
    %997 = vmatpush1.bf16.msra.mxu0 0
    %998 = vmatprep.subr.bf16.mxu0 0
    %999 = vmatpush1.bf16.msra.mxu0 %v983
    %1000 = vmatprep.subr.bf16.mxu0 0
    %1001 = vmatpush1.bf16.msra.mxu0 %v982
    %1002 = vmatprep.subr.bf16.mxu0 0
    %1003 = vmatpush2.bf16.msra.mxu0 0
    %1004 = vmatprep.subr.bf16.mxu0 0
    %1005 = vmatpush2.bf16.msra.mxu0 0
    %1006 = vmatprep.subr.bf16.mxu0 0
    %1007 = vmatpush2.bf16.msra.mxu0 0
    %1008 = vmatprep.subr.bf16.mxu0 0
    %1009 = vmatpush2.bf16.msra.mxu0 0
    %1010 = vmatprep.subr.bf16.mxu0 0
    %1011 = vmatpush2.bf16.msra.mxu0 0
    %1012 = vmatprep.subr.bf16.mxu0 0
    %1013 = vmatpush2.bf16.msra.mxu0 0
    %1014 = vmatprep.subr.bf16.mxu0 0
    %1015 = vmatpush2.bf16.msra.mxu0 0
    %1016 = vmatprep.subr.bf16.mxu0 0
    %1017 = vmatpush2.bf16.msra.mxu0 0
    %1018 = vmatprep.mubr.bf16.mxu0 0
    %1019 = vmatmul.mubr.bf16.gmra.mxu0 %v921
    %v1020 = vpop.f32.mrf.mxu0
    %v1021 = vadd.f32 0.0, %v1020
    %v1022 = vpop.f32.mrf.mxu0
    %v1023 = vpop.f32.mrf.mxu0
    %v1024 = vadd.f32 0.0, %v1023
    %v1025 = vpop.f32.mrf.mxu0
    %1026 = vmatprep.mubr.bf16.mxu0 0
    %1027 = vmatmul.mubr.bf16.gmra.mxu0 %v924
    %v1028 = vpop.f32.mrf.mxu0
    %v1029 = vadd.f32 0.0, %v1028
    %v1030 = vpop.f32.mrf.mxu0
    %v1031 = vpop.f32.mrf.mxu0
    %v1032 = vpop.f32.mrf.mxu0
    %1033 = vdwg.mxu0
    %v1034 = vpack.c.bf16 %v902, %v902
    %v1035 = vpack.c.bf16 %v964, %v961
    %v1036 = vpack.c.bf16 %v1024, %v1021
    %v1038 = vsel %vm260, %v1034, 0
    %v1041 = vsel %vm260, %v1035, 0
    %1043 = vmatprep.subr.bf16.mxu0 0
    %1044 = vmatpush1.bf16.xpose.msra.mxu0 0
    %1045 = vmatprep.subr.bf16.mxu0 0
    %1046 = vmatpush1.bf16.xpose.msra.mxu0 0
    %1047 = vmatprep.subr.bf16.mxu0 0
    %1048 = vmatpush1.bf16.xpose.msra.mxu0 0
    %1049 = vmatprep.subr.bf16.mxu0 0
    %1050 = vmatpush1.bf16.xpose.msra.mxu0 0
    %1051 = vmatprep.subr.bf16.mxu0 0
    %1052 = vmatpush1.bf16.xpose.msra.mxu0 0
    %1053 = vmatprep.subr.bf16.mxu0 0
    %1054 = vmatpush1.bf16.xpose.msra.mxu0 0
    %1055 = vmatprep.subr.bf16.mxu0 0
    %1056 = vmatpush1.bf16.xpose.msra.mxu0 0
    %1057 = vmatprep.subr.bf16.mxu0 0
    %1058 = vmatpush1.bf16.xpose.msra.mxu0 %v1041
    %1059 = vmatprep.subr.bf16.mxu0 0
    %1060 = vmatpush2.bf16.xpose.msra.mxu0 0
    %1061 = vmatprep.subr.bf16.mxu0 0
    %1062 = vmatpush2.bf16.xpose.msra.mxu0 0
    %1063 = vmatprep.subr.bf16.mxu0 0
    %1064 = vmatpush2.bf16.xpose.msra.mxu0 0
    %1065 = vmatprep.subr.bf16.mxu0 0
    %1066 = vmatpush2.bf16.xpose.msra.mxu0 0
    %1067 = vmatprep.subr.bf16.mxu0 0
    %1068 = vmatpush2.bf16.xpose.msra.mxu0 0
    %1069 = vmatprep.subr.bf16.mxu0 0
    %1070 = vmatpush2.bf16.xpose.msra.mxu0 0
    %1071 = vmatprep.subr.bf16.mxu0 0
    %1072 = vmatpush2.bf16.xpose.msra.mxu0 0
    %1073 = vmatprep.subr.bf16.mxu0 0
    %1074 = vmatpush2.bf16.xpose.msra.mxu0 0
    %1075 = vmatprep.mubr.bf16.mxu0 0
    %1076 = vmatmul.mubr.bf16.gmra.mxu0 %v1038
    %v1077 = vpop.f32.mrf.mxu0
    %v1078 = vadd.f32 0.0, %v1077
    %v1079 = vpop.f32.mrf.mxu0
    %v1080 = vpop.f32.mrf.mxu0
    %v1081 = vpop.f32.mrf.mxu0
    %1082 = vdwg.mxu0
    %v1083 = vmul.f32 %v1078, 0.25
    %vm1084 = vcmask 97280
    %v1085 = vsel %vm1084, %v1083, -inf
    %1086 = vmax.xlane.f32.xlu0 %v1085
    %v1087 = vpop.xlane.xlu0 %1086
    %v1088 = vsub.f32 %v1083, %v1087
    %v1089 = vmul.f32 %v1088, 1.442695
    %v1090 = vpow.pop %v1089
    %v1091 = vsel %vm1084, %v1090, 0.0
    %1092 = vadd.xlane.f32.xlu0 %v1091
    %v1093 = vpop.xlane.xlu0 %1092
    %v1094 = vrcp.pop %v1093
    %v1095 = vmul.f32 %v1090, %v1094
    %v1096 = vpack.c.bf16 %v1095, %v1095
    %v1098 = vsel %vm1084, %v1096, 0
    %vm1100 = vcmask 1045504
    %v1102 = vsel %vm1100, %v1036, 0
    %1104 = vmatprep.subr.bf16.mxu0 0
    %1105 = vmatpush1.bf16.msra.mxu0 0
    %1106 = vmatprep.subr.bf16.mxu0 0
    %1107 = vmatpush1.bf16.msra.mxu0 0
    %1108 = vmatprep.subr.bf16.mxu0 0
    %1109 = vmatpush1.bf16.msra.mxu0 0
    %1110 = vmatprep.subr.bf16.mxu0 0
    %1111 = vmatpush1.bf16.msra.mxu0 0
    %1112 = vmatprep.subr.bf16.mxu0 0
    %1113 = vmatpush1.bf16.msra.mxu0 0
    %1114 = vmatprep.subr.bf16.mxu0 0
    %1115 = vmatpush1.bf16.msra.mxu0 0
    %1116 = vmatprep.subr.bf16.mxu0 0
    %1117 = vmatpush1.bf16.msra.mxu0 0
    %1118 = vmatprep.subr.bf16.mxu0 0
    %1119 = vmatpush1.bf16.msra.mxu0 %v1102
    %1120 = vmatprep.subr.bf16.mxu0 0
    %1121 = vmatpush2.bf16.msra.mxu0 0
    %1122 = vmatprep.subr.bf16.mxu0 0
    %1123 = vmatpush2.bf16.msra.mxu0 0
    %1124 = vmatprep.subr.bf16.mxu0 0
    %1125 = vmatpush2.bf16.msra.mxu0 0
    %1126 = vmatprep.subr.bf16.mxu0 0
    %1127 = vmatpush2.bf16.msra.mxu0 0
    %1128 = vmatprep.subr.bf16.mxu0 0
    %1129 = vmatpush2.bf16.msra.mxu0 0
    %1130 = vmatprep.subr.bf16.mxu0 0
    %1131 = vmatpush2.bf16.msra.mxu0 0
    %1132 = vmatprep.subr.bf16.mxu0 0
    %1133 = vmatpush2.bf16.msra.mxu0 0
    %1134 = vmatprep.subr.bf16.mxu0 0
    %1135 = vmatpush2.bf16.msra.mxu0 0
    %1136 = vmatprep.mubr.bf16.mxu0 0
    %1137 = vmatmul.mubr.bf16.gmra.mxu0 %v1098
    %v1138 = vpop.f32.mrf.mxu0
    %v1139 = vadd.f32 0.0, %v1138
    %v1140 = vpop.f32.mrf.mxu0
    %v1141 = vpop.f32.mrf.mxu0
    %v1142 = vpop.f32.mrf.mxu0
    %1143 = vdwg.mxu0
    %1145 = vrot.lane.b32.xlu0 %v1034, 112
    %v1146 = vpop.permute.xlu0 %1145
    %1148 = vrot.lane.b32.xlu0 %v1035, 112
    %v1149 = vpop.permute.xlu0 %1148
    %v1151 = vsel %vm260, %v1146, 0
    %v1154 = vsel %vm260, %v1149, 0
    %1156 = vmatprep.subr.bf16.mxu0 0
    %1157 = vmatpush1.bf16.xpose.msra.mxu0 0
    %1158 = vmatprep.subr.bf16.mxu0 0
    %1159 = vmatpush1.bf16.xpose.msra.mxu0 0
    %1160 = vmatprep.subr.bf16.mxu0 0
    %1161 = vmatpush1.bf16.xpose.msra.mxu0 0
    %1162 = vmatprep.subr.bf16.mxu0 0
    %1163 = vmatpush1.bf16.xpose.msra.mxu0 0
    %1164 = vmatprep.subr.bf16.mxu0 0
    %1165 = vmatpush1.bf16.xpose.msra.mxu0 0
    %1166 = vmatprep.subr.bf16.mxu0 0
    %1167 = vmatpush1.bf16.xpose.msra.mxu0 0
    %1168 = vmatprep.subr.bf16.mxu0 0
    %1169 = vmatpush1.bf16.xpose.msra.mxu0 0
    %1170 = vmatprep.subr.bf16.mxu0 0
    %1171 = vmatpush1.bf16.xpose.msra.mxu0 %v1154
    %1172 = vmatprep.subr.bf16.mxu0 0
    %1173 = vmatpush2.bf16.xpose.msra.mxu0 0
    %1174 = vmatprep.subr.bf16.mxu0 0
    %1175 = vmatpush2.bf16.xpose.msra.mxu0 0
    %1176 = vmatprep.subr.bf16.mxu0 0
    %1177 = vmatpush2.bf16.xpose.msra.mxu0 0
    %1178 = vmatprep.subr.bf16.mxu0 0
    %1179 = vmatpush2.bf16.xpose.msra.mxu0 0
    %1180 = vmatprep.subr.bf16.mxu0 0
    %1181 = vmatpush2.bf16.xpose.msra.mxu0 0
    %1182 = vmatprep.subr.bf16.mxu0 0
    %1183 = vmatpush2.bf16.xpose.msra.mxu0 0
    %1184 = vmatprep.subr.bf16.mxu0 0
    %1185 = vmatpush2.bf16.xpose.msra.mxu0 0
    %1186 = vmatprep.subr.bf16.mxu0 0
    %1187 = vmatpush2.bf16.xpose.msra.mxu0 0
    %1188 = vmatprep.mubr.bf16.mxu0 0
    %1189 = vmatmul.mubr.bf16.gmra.mxu0 %v1151
    %v1190 = vpop.f32.mrf.mxu0
    %v1191 = vadd.f32 0.0, %v1190
    %v1192 = vpop.f32.mrf.mxu0
    %v1193 = vpop.f32.mrf.mxu0
    %v1194 = vpop.f32.mrf.mxu0
    %1195 = vdwg.mxu0
    %v1196 = vmul.f32 %v1191, 0.25
    %v1197 = vsel %vm1084, %v1196, -inf
    %1198 = vmax.xlane.f32.xlu0 %v1197
    %v1199 = vpop.xlane.xlu0 %1198
    %v1200 = vsub.f32 %v1196, %v1199
    %v1201 = vmul.f32 %v1200, 1.442695
    %v1202 = vpow.pop %v1201
    %v1203 = vsel %vm1084, %v1202, 0.0
    %1204 = vadd.xlane.f32.xlu0 %v1203
    %v1205 = vpop.xlane.xlu0 %1204
    %v1206 = vrcp.pop %v1205
    %v1207 = vmul.f32 %v1202, %v1206
    %v1208 = vpack.c.bf16 %v1207, %v1207
    %1210 = vrot.lane.b32.xlu0 %v1036, 96
    %v1211 = vpop.permute.xlu0 %1210
    %v1213 = vsel %vm1084, %v1208, 0
    %v1216 = vsel %vm1100, %v1211, 0
    %1218 = vmatprep.subr.bf16.mxu0 0
    %1219 = vmatpush1.bf16.msra.mxu0 0
    %1220 = vmatprep.subr.bf16.mxu0 0
    %1221 = vmatpush1.bf16.msra.mxu0 0
    %1222 = vmatprep.subr.bf16.mxu0 0
    %1223 = vmatpush1.bf16.msra.mxu0 0
    %1224 = vmatprep.subr.bf16.mxu0 0
    %1225 = vmatpush1.bf16.msra.mxu0 0
    %1226 = vmatprep.subr.bf16.mxu0 0
    %1227 = vmatpush1.bf16.msra.mxu0 0
    %1228 = vmatprep.subr.bf16.mxu0 0
    %1229 = vmatpush1.bf16.msra.mxu0 0
    %1230 = vmatprep.subr.bf16.mxu0 0
    %1231 = vmatpush1.bf16.msra.mxu0 0
    %1232 = vmatprep.subr.bf16.mxu0 0
    %1233 = vmatpush1.bf16.msra.mxu0 %v1216
    %1234 = vmatprep.subr.bf16.mxu0 0
    %1235 = vmatpush2.bf16.msra.mxu0 0
    %1236 = vmatprep.subr.bf16.mxu0 0
    %1237 = vmatpush2.bf16.msra.mxu0 0
    %1238 = vmatprep.subr.bf16.mxu0 0
    %1239 = vmatpush2.bf16.msra.mxu0 0
    %1240 = vmatprep.subr.bf16.mxu0 0
    %1241 = vmatpush2.bf16.msra.mxu0 0
    %1242 = vmatprep.subr.bf16.mxu0 0
    %1243 = vmatpush2.bf16.msra.mxu0 0
    %1244 = vmatprep.subr.bf16.mxu0 0
    %1245 = vmatpush2.bf16.msra.mxu0 0
    %1246 = vmatprep.subr.bf16.mxu0 0
    %1247 = vmatpush2.bf16.msra.mxu0 0
    %1248 = vmatprep.subr.bf16.mxu0 0
    %1249 = vmatpush2.bf16.msra.mxu0 0
    %1250 = vmatprep.mubr.bf16.mxu0 0
    %1251 = vmatmul.mubr.bf16.gmra.mxu0 %v1213
    %v1252 = vpop.f32.mrf.mxu0
    %v1253 = vadd.f32 0.0, %v1252
    %v1254 = vpop.f32.mrf.mxu0
    %v1255 = vpop.f32.mrf.mxu0
    %v1256 = vpop.f32.mrf.mxu0
    %1257 = vdwg.mxu0
    %1259 = vrot.lane.b32.xlu0 %v1253, 32
    %v1260 = vpop.permute.xlu0 %1259
    %v1262 = vsel %vm106, %v1139, %v1260
    %v1263 = vpack.c.bf16 %v905, %v905
    %v1264 = vpack.c.bf16 %v969, %v964
    %v1265 = vpack.c.bf16 %v1029, %v1024
    %v1267 = vrot.slane %v1264, 2
    %v1269 = vsel %vm260, %v1263, 0
    %v1272 = vsel %vm260, %v1267, 0
    %1274 = vmatprep.subr.bf16.mxu0 0
    %1275 = vmatpush1.bf16.xpose.msra.mxu0 0
    %1276 = vmatprep.subr.bf16.mxu0 0
    %1277 = vmatpush1.bf16.xpose.msra.mxu0 0
    %1278 = vmatprep.subr.bf16.mxu0 0
    %1279 = vmatpush1.bf16.xpose.msra.mxu0 0
    %1280 = vmatprep.subr.bf16.mxu0 0
    %1281 = vmatpush1.bf16.xpose.msra.mxu0 0
    %1282 = vmatprep.subr.bf16.mxu0 0
    %1283 = vmatpush1.bf16.xpose.msra.mxu0 0
    %1284 = vmatprep.subr.bf16.mxu0 0
    %1285 = vmatpush1.bf16.xpose.msra.mxu0 0
    %1286 = vmatprep.subr.bf16.mxu0 0
    %1287 = vmatpush1.bf16.xpose.msra.mxu0 0
    %1288 = vmatprep.subr.bf16.mxu0 0
    %1289 = vmatpush1.bf16.xpose.msra.mxu0 %v1272
    %1290 = vmatprep.subr.bf16.mxu0 0
    %1291 = vmatpush2.bf16.xpose.msra.mxu0 0
    %1292 = vmatprep.subr.bf16.mxu0 0
    %1293 = vmatpush2.bf16.xpose.msra.mxu0 0
    %1294 = vmatprep.subr.bf16.mxu0 0
    %1295 = vmatpush2.bf16.xpose.msra.mxu0 0
    %1296 = vmatprep.subr.bf16.mxu0 0
    %1297 = vmatpush2.bf16.xpose.msra.mxu0 0
    %1298 = vmatprep.subr.bf16.mxu0 0
    %1299 = vmatpush2.bf16.xpose.msra.mxu0 0
    %1300 = vmatprep.subr.bf16.mxu0 0
    %1301 = vmatpush2.bf16.xpose.msra.mxu0 0
    %1302 = vmatprep.subr.bf16.mxu0 0
    %1303 = vmatpush2.bf16.xpose.msra.mxu0 0
    %1304 = vmatprep.subr.bf16.mxu0 0
    %1305 = vmatpush2.bf16.xpose.msra.mxu0 0
    %1306 = vmatprep.mubr.bf16.mxu0 0
    %1307 = vmatmul.mubr.bf16.gmra.mxu0 %v1269
    %v1308 = vpop.f32.mrf.mxu0
    %v1309 = vadd.f32 0.0, %v1308
    %v1310 = vpop.f32.mrf.mxu0
    %v1311 = vpop.f32.mrf.mxu0
    %v1312 = vpop.f32.mrf.mxu0
    %1313 = vdwg.mxu0
    %v1314 = vmul.f32 %v1309, 0.25
    %v1315 = vsel %vm1084, %v1314, -inf
    %1316 = vmax.xlane.f32.xlu0 %v1315
    %v1317 = vpop.xlane.xlu0 %1316
    %v1318 = vsub.f32 %v1314, %v1317
    %v1319 = vmul.f32 %v1318, 1.442695
    %v1320 = vpow.pop %v1319
    %v1321 = vsel %vm1084, %v1320, 0.0
    %1322 = vadd.xlane.f32.xlu0 %v1321
    %v1323 = vpop.xlane.xlu0 %1322
    %v1324 = vrcp.pop %v1323
    %v1325 = vmul.f32 %v1320, %v1324
    %v1326 = vpack.c.bf16 %v1325, %v1325
    %v1328 = vrot.slane %v1265, 2
    %v1330 = vsel %vm1084, %v1326, 0
    %v1333 = vsel %vm1100, %v1328, 0
    %1335 = vmatprep.subr.bf16.mxu0 0
    %1336 = vmatpush1.bf16.msra.mxu0 0
    %1337 = vmatprep.subr.bf16.mxu0 0
    %1338 = vmatpush1.bf16.msra.mxu0 0
    %1339 = vmatprep.subr.bf16.mxu0 0
    %1340 = vmatpush1.bf16.msra.mxu0 0
    %1341 = vmatprep.subr.bf16.mxu0 0
    %1342 = vmatpush1.bf16.msra.mxu0 0
    %1343 = vmatprep.subr.bf16.mxu0 0
    %1344 = vmatpush1.bf16.msra.mxu0 0
    %1345 = vmatprep.subr.bf16.mxu0 0
    %1346 = vmatpush1.bf16.msra.mxu0 0
    %1347 = vmatprep.subr.bf16.mxu0 0
    %1348 = vmatpush1.bf16.msra.mxu0 0
    %1349 = vmatprep.subr.bf16.mxu0 0
    %1350 = vmatpush1.bf16.msra.mxu0 %v1333
    %1351 = vmatprep.subr.bf16.mxu0 0
    %1352 = vmatpush2.bf16.msra.mxu0 0
    %1353 = vmatprep.subr.bf16.mxu0 0
    %1354 = vmatpush2.bf16.msra.mxu0 0
    %1355 = vmatprep.subr.bf16.mxu0 0
    %1356 = vmatpush2.bf16.msra.mxu0 0
    %1357 = vmatprep.subr.bf16.mxu0 0
    %1358 = vmatpush2.bf16.msra.mxu0 0
    %1359 = vmatprep.subr.bf16.mxu0 0
    %1360 = vmatpush2.bf16.msra.mxu0 0
    %1361 = vmatprep.subr.bf16.mxu0 0
    %1362 = vmatpush2.bf16.msra.mxu0 0
    %1363 = vmatprep.subr.bf16.mxu0 0
    %1364 = vmatpush2.bf16.msra.mxu0 0
    %1365 = vmatprep.subr.bf16.mxu0 0
    %1366 = vmatpush2.bf16.msra.mxu0 0
    %1367 = vmatprep.mubr.bf16.mxu0 0
    %1368 = vmatmul.mubr.bf16.gmra.mxu0 %v1330
    %v1369 = vpop.f32.mrf.mxu0
    %v1370 = vadd.f32 0.0, %v1369
    %v1371 = vpop.f32.mrf.mxu0
    %v1372 = vpop.f32.mrf.mxu0
    %v1373 = vpop.f32.mrf.mxu0
    %1374 = vdwg.mxu0
    %1376 = vrot.lane.b32.xlu0 %v1263, 112
    %v1377 = vpop.permute.xlu0 %1376
    %1378 = vrot.lane.b32.xlu0 %v1267, 112
    %v1379 = vpop.permute.xlu0 %1378
    %v1381 = vsel %vm260, %v1377, 0
    %v1384 = vsel %vm260, %v1379, 0
    %1386 = vmatprep.subr.bf16.mxu0 0
    %1387 = vmatpush1.bf16.xpose.msra.mxu0 0
    %1388 = vmatprep.subr.bf16.mxu0 0
    %1389 = vmatpush1.bf16.xpose.msra.mxu0 0
    %1390 = vmatprep.subr.bf16.mxu0 0
    %1391 = vmatpush1.bf16.xpose.msra.mxu0 0
    %1392 = vmatprep.subr.bf16.mxu0 0
    %1393 = vmatpush1.bf16.xpose.msra.mxu0 0
    %1394 = vmatprep.subr.bf16.mxu0 0
    %1395 = vmatpush1.bf16.xpose.msra.mxu0 0
    %1396 = vmatprep.subr.bf16.mxu0 0
    %1397 = vmatpush1.bf16.xpose.msra.mxu0 0
    %1398 = vmatprep.subr.bf16.mxu0 0
    %1399 = vmatpush1.bf16.xpose.msra.mxu0 0
    %1400 = vmatprep.subr.bf16.mxu0 0
    %1401 = vmatpush1.bf16.xpose.msra.mxu0 %v1384
    %1402 = vmatprep.subr.bf16.mxu0 0
    %1403 = vmatpush2.bf16.xpose.msra.mxu0 0
    %1404 = vmatprep.subr.bf16.mxu0 0
    %1405 = vmatpush2.bf16.xpose.msra.mxu0 0
    %1406 = vmatprep.subr.bf16.mxu0 0
    %1407 = vmatpush2.bf16.xpose.msra.mxu0 0
    %1408 = vmatprep.subr.bf16.mxu0 0
    %1409 = vmatpush2.bf16.xpose.msra.mxu0 0
    %1410 = vmatprep.subr.bf16.mxu0 0
    %1411 = vmatpush2.bf16.xpose.msra.mxu0 0
    %1412 = vmatprep.subr.bf16.mxu0 0
    %1413 = vmatpush2.bf16.xpose.msra.mxu0 0
    %1414 = vmatprep.subr.bf16.mxu0 0
    %1415 = vmatpush2.bf16.xpose.msra.mxu0 0
    %1416 = vmatprep.subr.bf16.mxu0 0
    %1417 = vmatpush2.bf16.xpose.msra.mxu0 0
    %1418 = vmatprep.mubr.bf16.mxu0 0
    %1419 = vmatmul.mubr.bf16.gmra.mxu0 %v1381
    %v1420 = vpop.f32.mrf.mxu0
    %v1421 = vadd.f32 0.0, %v1420
    %v1422 = vpop.f32.mrf.mxu0
    %v1423 = vpop.f32.mrf.mxu0
    %v1424 = vpop.f32.mrf.mxu0
    %1425 = vdwg.mxu0
    %v1426 = vmul.f32 %v1421, 0.25
    %v1427 = vsel %vm1084, %v1426, -inf
    %1428 = vmax.xlane.f32.xlu0 %v1427
    %v1429 = vpop.xlane.xlu0 %1428
    %v1430 = vsub.f32 %v1426, %v1429
    %v1431 = vmul.f32 %v1430, 1.442695
    %v1432 = vpow.pop %v1431
    %v1433 = vsel %vm1084, %v1432, 0.0
    %1434 = vadd.xlane.f32.xlu0 %v1433
    %v1435 = vpop.xlane.xlu0 %1434
    %v1436 = vrcp.pop %v1435
    %v1437 = vmul.f32 %v1432, %v1436
    %v1438 = vpack.c.bf16 %v1437, %v1437
    %1439 = vrot.lane.b32.xlu0 %v1328, 96
    %v1440 = vpop.permute.xlu0 %1439
    %v1442 = vsel %vm1084, %v1438, 0
    %v1445 = vsel %vm1100, %v1440, 0
    %1447 = vmatprep.subr.bf16.mxu0 0
    %1448 = vmatpush1.bf16.msra.mxu0 0
    %1449 = vmatprep.subr.bf16.mxu0 0
    %1450 = vmatpush1.bf16.msra.mxu0 0
    %1451 = vmatprep.subr.bf16.mxu0 0
    %1452 = vmatpush1.bf16.msra.mxu0 0
    %1453 = vmatprep.subr.bf16.mxu0 0
    %1454 = vmatpush1.bf16.msra.mxu0 0
    %1455 = vmatprep.subr.bf16.mxu0 0
    %1456 = vmatpush1.bf16.msra.mxu0 0
    %1457 = vmatprep.subr.bf16.mxu0 0
    %1458 = vmatpush1.bf16.msra.mxu0 0
    %1459 = vmatprep.subr.bf16.mxu0 0
    %1460 = vmatpush1.bf16.msra.mxu0 0
    %1461 = vmatprep.subr.bf16.mxu0 0
    %1462 = vmatpush1.bf16.msra.mxu0 %v1445
    %1463 = vmatprep.subr.bf16.mxu0 0
    %1464 = vmatpush2.bf16.msra.mxu0 0
    %1465 = vmatprep.subr.bf16.mxu0 0
    %1466 = vmatpush2.bf16.msra.mxu0 0
    %1467 = vmatprep.subr.bf16.mxu0 0
    %1468 = vmatpush2.bf16.msra.mxu0 0
    %1469 = vmatprep.subr.bf16.mxu0 0
    %1470 = vmatpush2.bf16.msra.mxu0 0
    %1471 = vmatprep.subr.bf16.mxu0 0
    %1472 = vmatpush2.bf16.msra.mxu0 0
    %1473 = vmatprep.subr.bf16.mxu0 0
    %1474 = vmatpush2.bf16.msra.mxu0 0
    %1475 = vmatprep.subr.bf16.mxu0 0
    %1476 = vmatpush2.bf16.msra.mxu0 0
    %1477 = vmatprep.subr.bf16.mxu0 0
    %1478 = vmatpush2.bf16.msra.mxu0 0
    %1479 = vmatprep.mubr.bf16.mxu0 0
    %1480 = vmatmul.mubr.bf16.gmra.mxu0 %v1442
    %v1481 = vpop.f32.mrf.mxu0
    %v1482 = vadd.f32 0.0, %v1481
    %v1483 = vpop.f32.mrf.mxu0
    %v1484 = vpop.f32.mrf.mxu0
    %v1485 = vpop.f32.mrf.mxu0
    %1486 = vdwg.mxu0
    %1488 = vrot.lane.b32.xlu0 %v1482, 32
    %v1489 = vpop.permute.xlu0 %1488
    %v1491 = vsel %vm106, %v1370, %v1489
    %v1492 = vpack.c.bf16 %v1491, %v1262
    %v1501 = vunpack.c.l.b16 %v835
    %v1502 = vunpack.c.l.b16 %v836
    %v1503 = vunpack.c.l.b16 %v837
    %v1504 = vunpack.c.l.b16 %v838
    %v1505 = vunpack.c.l.b16 %v839
    %v1506 = vunpack.c.l.b16 %v840
    %v1507 = vunpack.c.l.b16 %v841
    %v1508 = vunpack.c.l.b16 %v842
    %v1509 = vpack.c.b16 %v1502, %v1501
    %v1510 = vpack.c.b16 %v1504, %v1503
    %v1511 = vpack.c.b16 %v1506, %v1505
    %v1512 = vpack.c.b16 %v1508, %v1507
    %v1518 = vsel %vm739, %v1492, 0
    %1520 = vmatprep.subr.bf16.mxu0 0
    %1521 = vmatpush1.bf16.msra.mxu0 0
    %1522 = vmatprep.subr.bf16.mxu0 0
    %1523 = vmatpush1.bf16.msra.mxu0 0
    %1524 = vmatprep.subr.bf16.mxu0 0
    %1525 = vmatpush1.bf16.msra.mxu0 0
    %1526 = vmatprep.subr.bf16.mxu0 0
    %1527 = vmatpush1.bf16.msra.mxu0 0
    %1528 = vmatprep.subr.bf16.mxu0 0
    %1529 = vmatpush1.bf16.msra.mxu0 %v1512
    %1530 = vmatprep.subr.bf16.mxu0 0
    %1531 = vmatpush1.bf16.msra.mxu0 %v1511
    %1532 = vmatprep.subr.bf16.mxu0 0
    %1533 = vmatpush1.bf16.msra.mxu0 %v1510
    %1534 = vmatprep.subr.bf16.mxu0 0
    %1535 = vmatpush1.bf16.msra.mxu0 %v1509
    %1536 = vmatprep.subr.bf16.mxu0 0
    %1537 = vmatpush2.bf16.msra.mxu0 0
    %1538 = vmatprep.subr.bf16.mxu0 0
    %1539 = vmatpush2.bf16.msra.mxu0 0
    %1540 = vmatprep.subr.bf16.mxu0 0
    %1541 = vmatpush2.bf16.msra.mxu0 0
    %1542 = vmatprep.subr.bf16.mxu0 0
    %1543 = vmatpush2.bf16.msra.mxu0 0
    %1544 = vmatprep.subr.bf16.mxu0 0
    %1545 = vmatpush2.bf16.msra.mxu0 0
    %1546 = vmatprep.subr.bf16.mxu0 0
    %1547 = vmatpush2.bf16.msra.mxu0 0
    %1548 = vmatprep.subr.bf16.mxu0 0
    %1549 = vmatpush2.bf16.msra.mxu0 0
    %1550 = vmatprep.subr.bf16.mxu0 0
    %1551 = vmatpush2.bf16.msra.mxu0 0
    %1552 = vmatprep.mubr.bf16.mxu0 0
    %1553 = vmatmul.mubr.bf16.gmra.mxu0 %v1518
    %v1554 = vpop.f32.mrf.mxu0
    %v1555 = vadd.f32 %v821, %v1554
    %v1556 = vpop.f32.mrf.mxu0
    %v1557 = vpop.f32.mrf.mxu0
    %v1558 = vadd.f32 %v822, %v1557
    %v1559 = vpop.f32.mrf.mxu0
    %1560 = vdwg.mxu0
    %v1561 = vsel %vm106, %v1555, 0.0
    %1562 = vadd.xlane.f32.xlu0 %v1561
    %v1563 = vpop.xlane.xlu0 %1562
    %v1564 = vsel %vm106, %v1558, 0.0
    %1565 = vadd.xlane.f32.xlu0 %v1564
    %v1566 = vpop.xlane.xlu0 %1565
    %v1567 = vmul.f32 %v1563, %v790
    %v1568 = vmul.f32 %v1566, %v790
    %v1569 = vsub.f32 %v1555, %v1567
    %v1570 = vsub.f32 %v1558, %v1568
    %v1571 = vmul.f32 %v1569, %v1569
    %v1572 = vmul.f32 %v1570, %v1570
    %v1573 = vsel %vm106, %v1571, 0.0
    %1574 = vadd.xlane.f32.xlu0 %v1573
    %v1575 = vpop.xlane.xlu0 %1574
    %v1576 = vsel %vm106, %v1572, 0.0
    %1577 = vadd.xlane.f32.xlu0 %v1576
    %v1578 = vpop.xlane.xlu0 %1577
    %v1579 = vmul.f32 %v1575, %v790
    %v1580 = vmul.f32 %v1578, %v790
    %v1581 = vadd.f32 %v1579, 1e-05
    %v1582 = vadd.f32 %v1580, 1e-05
    %v1583 = vrsqrt.pop %v1581
    %v1584 = vrsqrt.pop %v1582
    %v1585 = vmul.f32 %v1569, %v1583
    %v1586 = vmul.f32 %v1570, %v1584
    %v1587 = vlaneseq
    %v1588 = vshrl.u32 %v1587, 7
    %v1589 = vsub.s32 4, %v1588
    %v1590 = vrot.slane %v72, %v1589
    %v1591 = vmul.f32 %v1585, %v1590
    %v1592 = vmul.f32 %v1586, %v1590
    %v1593 = vlaneseq
    %v1594 = vshrl.u32 %v1593, 7
    %v1595 = vsub.s32 5, %v1594
    %v1596 = vrot.slane %v72, %v1595
    %v1597 = vadd.f32 %v1591, %v1596
    %v1598 = vadd.f32 %v1592, %v1596
    %v1599 = vpack.c.bf16 %v1598, %v1597
    %v1600 = vld [vmem:[#allocation2] sm:$0xf]
    %v1601 = vld [vmem:[#allocation2 + $0x4] sm:$0xf]
    %v1602 = vld [vmem:[#allocation2 + $0x8] sm:$0xf]
    %v1603 = vld [vmem:[#allocation2 + $0xc] sm:$0xf]
    %v1604 = vlaneseq
    %v1605 = vshrl.u32 %v1604, 7
    %v1606 = vsub.s32 1, %v1605
    %v1607 = vrot.slane %v72, %v1606
    %v1612 = vunpack.c.l.b16 %v1600
    %v1613 = vunpack.c.l.b16 %v1601
    %v1614 = vunpack.c.l.b16 %v1602
    %v1615 = vunpack.c.l.b16 %v1603
    %v1616 = vpack.c.b16 %v1613, %v1612
    %v1617 = vpack.c.b16 %v1615, %v1614
    %v1621 = vsel %vm106, %v1599, 0
    %1623 = vmatprep.subr.bf16.mxu0 0
    %1624 = vmatpush1.bf16.msra.mxu0 0
    %1625 = vmatprep.subr.bf16.mxu0 0
    %1626 = vmatpush1.bf16.msra.mxu0 0
    %1627 = vmatprep.subr.bf16.mxu0 0
    %1628 = vmatpush1.bf16.msra.mxu0 0
    %1629 = vmatprep.subr.bf16.mxu0 0
    %1630 = vmatpush1.bf16.msra.mxu0 0
    %1631 = vmatprep.subr.bf16.mxu0 0
    %1632 = vmatpush1.bf16.msra.mxu0 0
    %1633 = vmatprep.subr.bf16.mxu0 0
    %1634 = vmatpush1.bf16.msra.mxu0 0
    %1635 = vmatprep.subr.bf16.mxu0 0
    %1636 = vmatpush1.bf16.msra.mxu0 %v1617
    %1637 = vmatprep.subr.bf16.mxu0 0
    %1638 = vmatpush1.bf16.msra.mxu0 %v1616
    %1639 = vmatprep.subr.bf16.mxu0 0
    %1640 = vmatpush2.bf16.msra.mxu0 0
    %1641 = vmatprep.subr.bf16.mxu0 0
    %1642 = vmatpush2.bf16.msra.mxu0 0
    %1643 = vmatprep.subr.bf16.mxu0 0
    %1644 = vmatpush2.bf16.msra.mxu0 0
    %1645 = vmatprep.subr.bf16.mxu0 0
    %1646 = vmatpush2.bf16.msra.mxu0 0
    %1647 = vmatprep.subr.bf16.mxu0 0
    %1648 = vmatpush2.bf16.msra.mxu0 0
    %1649 = vmatprep.subr.bf16.mxu0 0
    %1650 = vmatpush2.bf16.msra.mxu0 0
    %1651 = vmatprep.subr.bf16.mxu0 0
    %1652 = vmatpush2.bf16.msra.mxu0 0
    %1653 = vmatprep.subr.bf16.mxu0 0
    %1654 = vmatpush2.bf16.msra.mxu0 0
    %1655 = vmatprep.mubr.bf16.mxu0 0
    %1656 = vmatmul.mubr.bf16.gmra.mxu0 %v1621
    %v1657 = vpop.f32.mrf.mxu0
    %v1658 = vadd.f32 %v1607, %v1657
    %v1659 = vpop.f32.mrf.mxu0
    %v1660 = vpop.f32.mrf.mxu0
    %v1661 = vadd.f32 %v1607, %v1660
    %v1662 = vpop.f32.mrf.mxu0
    %1663 = vdwg.mxu0
    %vm1664 = vcmp.gt.f32.partialorder %v1658, 0.0
    %vm1665 = vcmp.gt.f32.partialorder %v1661, 0.0
    %v1666 = vmul.f32 %v1658, 1.442695
    %v1667 = vpow.pop %v1666
    %v1668 = vmul.f32 %v1661, 1.442695
    %v1669 = vpow.pop %v1668
    %v1670 = vsub.f32 %v1667, 1.0
    %v1671 = vsub.f32 %v1669, 1.0
    %v1672 = vsel %vm1664, %v1658, %v1670
    %v1673 = vsel %vm1665, %v1661, %v1671
    %v1674 = vpack.c.bf16 %v1673, %v1672
    %v1675 = vld [vmem:[%s10] sm:$0xf]
    %v1676 = vld [vmem:[%s10 + $0x4] sm:$0xf]
    %v1677 = vld [vmem:[%s10 + $0x8] sm:$0xf]
    %v1678 = vld [vmem:[%s10 + $0xc] sm:$0xf]
    %v1679 = vlaneseq
    %v1680 = vshrl.u32 %v1679, 7
    %v1681 = vsub.s32 0, %v1680
    %v1682 = vrot.slane %v72, %v1681
    %v1687 = vunpack.c.l.b16 %v1675
    %v1688 = vunpack.c.l.b16 %v1676
    %v1689 = vunpack.c.l.b16 %v1677
    %v1690 = vunpack.c.l.b16 %v1678
    %v1691 = vpack.c.b16 %v1688, %v1687
    %v1692 = vpack.c.b16 %v1690, %v1689
    %v1696 = vsel %vm106, %v1674, 0
    %1698 = vmatprep.subr.bf16.mxu0 0
    %1699 = vmatpush1.bf16.msra.mxu0 0
    %1700 = vmatprep.subr.bf16.mxu0 0
    %1701 = vmatpush1.bf16.msra.mxu0 0
    %1702 = vmatprep.subr.bf16.mxu0 0
    %1703 = vmatpush1.bf16.msra.mxu0 0
    %1704 = vmatprep.subr.bf16.mxu0 0
    %1705 = vmatpush1.bf16.msra.mxu0 0
    %1706 = vmatprep.subr.bf16.mxu0 0
    %1707 = vmatpush1.bf16.msra.mxu0 0
    %1708 = vmatprep.subr.bf16.mxu0 0
    %1709 = vmatpush1.bf16.msra.mxu0 0
    %1710 = vmatprep.subr.bf16.mxu0 0
    %1711 = vmatpush1.bf16.msra.mxu0 %v1692
    %1712 = vmatprep.subr.bf16.mxu0 0
    %1713 = vmatpush1.bf16.msra.mxu0 %v1691
    %1714 = vmatprep.subr.bf16.mxu0 0
    %1715 = vmatpush2.bf16.msra.mxu0 0
    %1716 = vmatprep.subr.bf16.mxu0 0
    %1717 = vmatpush2.bf16.msra.mxu0 0
    %1718 = vmatprep.subr.bf16.mxu0 0
    %1719 = vmatpush2.bf16.msra.mxu0 0
    %1720 = vmatprep.subr.bf16.mxu0 0
    %1721 = vmatpush2.bf16.msra.mxu0 0
    %1722 = vmatprep.subr.bf16.mxu0 0
    %1723 = vmatpush2.bf16.msra.mxu0 0
    %1724 = vmatprep.subr.bf16.mxu0 0
    %1725 = vmatpush2.bf16.msra.mxu0 0
    %1726 = vmatprep.subr.bf16.mxu0 0
    %1727 = vmatpush2.bf16.msra.mxu0 0
    %1728 = vmatprep.subr.bf16.mxu0 0
    %1729 = vmatpush2.bf16.msra.mxu0 0
    %1730 = vmatprep.mubr.bf16.mxu0 0
    %1731 = vmatmul.mubr.bf16.gmra.mxu0 %v1696
    %v1732 = vpop.f32.mrf.mxu0
    %v1733 = vadd.f32 %v1682, %v1732
    %v1734 = vpop.f32.mrf.mxu0
    %v1735 = vpop.f32.mrf.mxu0
    %v1736 = vadd.f32 %v1682, %v1735
    %v1737 = vpop.f32.mrf.mxu0
    %1738 = vdwg.mxu0
    %v1739 = vadd.f32 %v1597, %v1733
    %v1740 = vadd.f32 %v1598, %v1736
    %v1741 = vsel %vm106, %v1739, 0.0
    %1742 = vadd.xlane.f32.xlu0 %v1741
    %v1743 = vpop.xlane.xlu0 %1742
    %v1744 = vsel %vm106, %v1740, 0.0
    %1745 = vadd.xlane.f32.xlu0 %v1744
    %v1746 = vpop.xlane.xlu0 %1745
    %v1747 = vmul.f32 %v1743, %v790
    %v1748 = vmul.f32 %v1746, %v790
    %v1749 = vsub.f32 %v1739, %v1747
    %v1750 = vsub.f32 %v1740, %v1748
    %v1751 = vmul.f32 %v1749, %v1749
    %v1752 = vmul.f32 %v1750, %v1750
    %v1753 = vsel %vm106, %v1751, 0.0
    %1754 = vadd.xlane.f32.xlu0 %v1753
    %v1755 = vpop.xlane.xlu0 %1754
    %v1756 = vsel %vm106, %v1752, 0.0
    %1757 = vadd.xlane.f32.xlu0 %v1756
    %v1758 = vpop.xlane.xlu0 %1757
    %v1759 = vmul.f32 %v1755, %v790
    %v1760 = vmul.f32 %v1758, %v790
    %v1761 = vadd.f32 %v1759, 1e-05
    %v1762 = vadd.f32 %v1760, 1e-05
    %v1763 = vrsqrt.pop %v1761
    %v1764 = vrsqrt.pop %v1762
    %v1765 = vmul.f32 %v1749, %v1763
    %v1766 = vmul.f32 %v1750, %v1764
    %v1767 = vlaneseq
    %v1768 = vshrl.u32 %v1767, 7
    %v1769 = vsub.s32 6, %v1768
    %v1770 = vrot.slane %v72, %v1769
    %v1771 = vmul.f32 %v1765, %v1770
    %v1772 = vmul.f32 %v1766, %v1770
    %v1773 = vlaneseq
    %v1774 = vshrl.u32 %v1773, 7
    %v1775 = vsub.s32 7, %v1774
    %v1776 = vrot.slane %v72, %v1775
    %v1777 = vadd.f32 %v1771, %v1776
    %v1778 = vadd.f32 %v1772, %v1776
    %1779 = vst.msk [vmem:[#allocation5] sm:$0xff] %vm106, %v1777
    %1780 = vst.msk [vmem:[#allocation5 + $0x8] sm:$0xff] %vm106, %v1778
    // Predicated region
    $region58: #{tpu_custom_call.1} parent=1 // pred_check
      _
    $region59: #{tpu_custom_call.1} parent=1 // pred_check_branch
      %1782 = sbr.rel (0) target = $region61
    $region60: #{tpu_custom_call.1} parent=1 // pred_region
      %s1784 = ssub.s32 256, 256
      %1785 = vsyncadd [#allocation4], %s1784
      %s1786 = sshll.u32 [#allocation5], 4
      %s1787 = int_to_ptr.vmem [resolvable:$true] %s1786
      %1792 = dma.vmem_to_hbm [thread:$0]  %s1787, 256, %s13, [#allocation4], 128, 128, 8
    $region61: #{tpu_custom_call.1} parent=1 // pred_fallthru
      _
    // Predicated region
    $region62: #{tpu_custom_call.1} parent=1 // pred_check
      _
    $region63: #{tpu_custom_call.1} parent=1 // pred_check_branch
      %1794 = sbr.rel (0) target = $region65
    $region64: #{tpu_custom_call.1} parent=1 // pred_region
      %1795 = dma.done [#allocation4], 256
    $region65: #{tpu_custom_call.1} parent=1 // pred_fallthru
      _
    %1796 = vsyncpa [#allocation3], 1
    %1797 = vsyncpa [#allocation4], 1

</llo_original>
